<compile_context>
chip_gen: v6e
topology: v6e:2x2x1
jax: 0.10.0
libtpu: 0.0.40
codegen_flags: <defaults>
</compile_context>

<pallas_src>
import numpy as np
import jax
import jax.numpy as jnp
from jax.experimental import pallas as pl
from jax.experimental.pallas import tpu as pltpu

LN_EPS = 1e-5  # torch nn.LayerNorm default


# ----------------------------- fused kernel ---------------------------------

def make_actionformer_kernel(*, B, N, T, H, DH, Z, D, XPAD):
    """Builds the fused forward kernel (all sizes static / trace-time)."""
    inner = H * DH
    BN = B * N
    f32 = jnp.float32

    def kernel(xpro_ref, wpro_ref, actdec_ref, actexp_ref, eps_ref, bias_ref,
               nlg_ref, nlb_ref,
               a1_wqkv_ref, a1_wo_ref, a1_bo_ref,
               ng_ref, nb_ref, w4_ref, b4_ref,
               wcm_ref, bcm_ref,
               wgs_ref, wgx_ref, bg_ref,
               dw_ref, db_ref,
               ox_ref, oact_ref):

        def layernorm(xv, g, b):
            mu = jnp.mean(xv, axis=-1, keepdims=True)
            var = jnp.mean(jnp.square(xv - mu), axis=-1, keepdims=True)
            return (xv - mu) * jax.lax.rsqrt(var + LN_EPS) * g + b

        def self_attention(xv, wqkv, wo, bo, bias):
            # All B*N rows at once; the block-diagonal additive bias keeps the
            # batches independent (exact).  1/sqrt(dim_head) is folded into Wq.
            qkv = jnp.dot(xv, wqkv, preferred_element_type=f32)       # (BN, 3*inner)
            heads = []
            for h in range(H):
                qh = qkv[:, h * DH:(h + 1) * DH]
                kh = qkv[:, inner + h * DH:inner + (h + 1) * DH]
                vh = qkv[:, 2 * inner + h * DH:2 * inner + (h + 1) * DH]
                sim = jax.lax.dot_general(qh, kh, (((1,), (1,)), ((), ())),
                                          preferred_element_type=f32) + bias
                sim = sim - jnp.max(sim, axis=-1, keepdims=True)
                p = jnp.exp(sim)
                p = p * pl.reciprocal(jnp.sum(p, axis=-1, keepdims=True),
                                      approx=True)
                heads.append(jnp.dot(p, vh, preferred_element_type=f32))
            out = jnp.concatenate(heads, axis=1)                      # (BN, inner)
            return jnp.dot(out, wo, preferred_element_type=f32) + bo

        # ---- prologue: linear1/2/3 fused into ONE block-diagonal matmul ----
        latent = jnp.dot(xpro_ref[...], wpro_ref[...],
                         preferred_element_type=f32)                  # (BN, D)
        x = self_attention(layernorm(latent, nlg_ref[...], nlb_ref[...]),
                           a1_wqkv_ref[...], a1_wo_ref[...], a1_bo_ref[...],
                           bias_ref[...])
        x = jnp.dot(layernorm(x, ng_ref[...], nb_ref[...]), w4_ref[...],
                    preferred_element_type=f32) + b4_ref[...]         # (BN, D)

        # ---- posterior / GRU-input path, hoisted out of the recurrence -----
        # attn2 / norm2 / norm3 and attn3's q/k projections have NO effect on
        # the forward output (softmax over a single context token == 1, so
        # attn3's output is independent of its query).  The per-step moments
        # therefore collapse to one matmul over all timesteps (exact).
        if T > 1:
            mexp = jnp.dot(actexp_ref[...], wcm_ref[...],
                           preferred_element_type=f32) + bcm_ref[...]  # ((T-1)BN, 2Z)
            std = jnp.exp(0.5 * jnp.clip(mexp[:, Z:], -30.0, 20.0))
            s_all = mexp[:, :Z] + std * eps_ref[...]                   # ((T-1)BN, Z)
            # input-path GRU pre-activations for every step (independent of x)
            g_s = jnp.dot(s_all, wgs_ref[...],
                          preferred_element_type=f32) + bg_ref[...]    # ((T-1)BN, 4D)
            wgx = wgx_ref[...]

        # ---- recurrence: exactly one (BN, D) x (D, 4D) MXU push per step ---
        x_steps = [x]
        for t in range(1, T):
            g = g_s[(t - 1) * BN:t * BN, :] + jnp.dot(
                x, wgx, preferred_element_type=f32)                    # (BN, 4D)
            r = jax.nn.sigmoid(g[:, :D])
            zg = jax.nn.sigmoid(g[:, D:2 * D])
            n = jnp.tanh(g[:, 2 * D:3 * D] + r * g[:, 3 * D:4 * D])
            x = (1.0 - zg) * n + zg * x
            x_steps.append(x)

        # ---- decoder: lane-dense matmuls + aligned full-ref stores ---------
        if XPAD:
            x_steps.append(jnp.zeros((XPAD, D), f32))
        dec_x = (jnp.concatenate(x_steps, axis=0)
                 if len(x_steps) > 1 else x_steps[0])                  # (T*BN+XPAD, D)
        dw = dw_ref[...]
        db = db_ref[...]
        ox_ref[...] = (jnp.dot(dec_x, dw, preferred_element_type=f32)
                       + db).astype(ox_ref.dtype)
        oact_ref[...] = (jnp.dot(actdec_ref[...], dw, preferred_element_type=f32)
                         + db).astype(oact_ref.dtype)

    return kernel


# ----------------------------- parameters -----------------------------------

def init_params(key, latent_hdmap_dims, latent_boxes_dims, num_heads, dim_head,
                embed_dim, z_channels, dec_out_dim):
    inner = num_heads * dim_head
    keys = iter(jax.random.split(key, 32))

    def dense(din, dout):
        return {'w': jax.random.normal(next(keys), (din, dout), jnp.float32) * 0.02,
                'b': jnp.zeros((dout,), jnp.float32)}

    def ln(d):
        return {'g': jnp.ones((d,), jnp.float32),
                'b': jnp.zeros((d,), jnp.float32)}

    def attn(dq, dc):
        return {'wq': jax.random.normal(next(keys), (dq, inner), jnp.float32) * 0.02,
                'wk': jax.random.normal(next(keys), (dc, inner), jnp.float32) * 0.02,
                'wv': jax.random.normal(next(keys), (dc, inner), jnp.float32) * 0.02,
                'wo': jax.random.normal(next(keys), (inner, dq), jnp.float32) * 0.02,
                'bo': jnp.zeros((dq,), jnp.float32)}

    return {
        'linear1': dense(latent_hdmap_dims, embed_dim),
        'linear2': dense(latent_boxes_dims, embed_dim),
        'linear3': dense(latent_hdmap_dims, embed_dim),
        'linear4': dense(embed_dim, embed_dim),
        'linear5': dense(embed_dim, 2 * z_channels),
        'norm_latent': ln(embed_dim), 'norm': ln(embed_dim),
        'norm2': ln(embed_dim), 'norm3': ln(embed_dim),
        'attn1': attn(embed_dim, embed_dim),
        # attn2/norm2/norm3 and attn3.wq/wk exist in the module but have no
        # effect on the forward output (single-key cross-attention) — kept for
        # structural fidelity, not passed to the kernel.
        'attn2': attn(embed_dim, embed_dim),
        'attn3': attn(embed_dim, embed_dim),
        # TODO(synk): gru_blocks_config is unspecified; implemented as a standard
        # GRU cell with input size z_channels and hidden size embed_dim.
        'gru': {'wi': jax.random.normal(next(keys), (z_channels, 3 * embed_dim), jnp.float32) * 0.02,
                'wh': jax.random.normal(next(keys), (embed_dim, 3 * embed_dim), jnp.float32) * 0.02,
                'bi': jnp.zeros((3 * embed_dim,), jnp.float32),
                'bh': jnp.zeros((3 * embed_dim,), jnp.float32)},
        # TODO(synk): decoder_config is unspecified; implemented as a per-token Linear decoder.
        'decoder': dense(embed_dim, dec_out_dim),
    }


# ----------------------------- forward wrapper -------------------------------

def actionformer_forward(params, latent_hdmap, latent_boxes, action,
                         latent_dense_range_image, *, num_heads, dim_head,
                         z_channels, sample_key):
    f32 = jnp.float32
    B = latent_hdmap.shape[0]
    Dh = int(np.prod(latent_hdmap.shape[1:]))
    NBOX, Db = latent_boxes.shape[1], latent_boxes.shape[2]
    T, D = action.shape[1], action.shape[2]
    N = NBOX + 2                    # tokens: hdmap + boxes + dense-range-image
    BN = B * N
    Z = z_channels
    scale = dim_head ** -0.5
    dec_out = params['decoder']['w'].shape[1]
    OUT_LANES = ((dec_out + 127) // 128) * 128

    row = lambda v: jnp.asarray(v, f32).reshape(1, -1)

    # ---------------- input layout prep (pure data movement) -----------------
    hdmap2 = latent_hdmap.reshape(B, Dh).astype(f32)
    dri2 = latent_dense_range_image.reshape(B, Dh).astype(f32)

    # Block-diagonal prologue input: row b*N+0 carries hdmap[b], rows 1..NBOX
    # carry the boxes, row N-1 carries the dense-range image; the trailing 3
    # indicator columns select the matching bias row of w_pro.
    KRAW = Dh + Db + Dh + 3
    KPRO = ((KRAW + 7) // 8) * 8
    x_pro = jnp.zeros((B, N, KPRO), f32)
    x_pro = x_pro.at[:, 0, :Dh].set(hdmap2)
    x_pro = x_pro.at[:, 0, KRAW - 3].set(1.0)
    x_pro = x_pro.at[:, 1:1 + NBOX, Dh:Dh + Db].set(latent_boxes.astype(f32))
    x_pro = x_pro.at[:, 1:1 + NBOX, KRAW - 2].set(1.0)
    x_pro = x_pro.at[:, 1 + NBOX, Dh + Db:Dh + Db + Dh].set(dri2)
    x_pro = x_pro.at[:, 1 + NBOX, KRAW - 1].set(1.0)
    x_pro = x_pro.reshape(BN, KPRO)

    w_pro = jnp.concatenate([
        params['linear1']['w'], params['linear2']['w'], params['linear3']['w'],
        row(params['linear1']['b']), row(params['linear2']['b']),
        row(params['linear3']['b']),
        jnp.zeros((KPRO - KRAW, D), f32)], axis=0)            # (KPRO, D)

    # Action tokens in (t, b) order.  Decoder sees zeros at t=0 and
    # action[:, t-1] afterwards; the moments path sees action[:, t-1]
    # replicated over the N latent tokens.
    act_tb = jnp.transpose(action.astype(f32), (1, 0, 2)).reshape(T * B, D)
    ACT_ROWS = T * B
    ACT_PAD = (-ACT_ROWS) % 8
    act_dec = jnp.concatenate(
        [jnp.zeros((B, D), f32), act_tb[:(T - 1) * B],
         jnp.zeros((ACT_PAD, D), f32)], axis=0)               # (ACT_ROWS+ACT_PAD, D)
    if T > 1:
        act_exp = jnp.broadcast_to(
            jnp.transpose(action[:, :T - 1].astype(f32), (1, 0, 2))[:, :, None, :],
            (T - 1, B, N, D)).reshape((T - 1) * BN, D)
    else:
        act_exp = jnp.zeros((BN, D), f32)

    # One gaussian draw for the whole recurrence (row (t-1)*B*N + b*N + token).
    eps = jax.random.normal(sample_key, (max(T - 1, 1) * BN, Z), f32)

    # Block-diagonal (per-batch) additive attention bias.
    bid = np.arange(BN) // N
    attn_bias = jnp.asarray(
        np.where(bid[:, None] == bid[None, :], 0.0, -1e9).astype(np.float32))

    # ---------------- weight prep (exact algebraic fusions) ------------------
    def fused_qkv(a):                         # attention scale folded into Wq
        return jnp.concatenate([a['wq'] * scale, a['wk'], a['wv']], axis=1)

    # attn3 with a single context token: softmax == 1, output independent of
    # the query, so attn3 + linear5 collapse into one (D, 2Z) affine map.
    wcm = params['attn3']['wv'] @ params['attn3']['wo'] @ params['linear5']['w']
    bcm = row(params['attn3']['bo'] @ params['linear5']['w']
              + params['linear5']['b'])

    # Fused GRU weights (torch gate order r, z, n); the hidden-path n term is
    # kept in its own column block so n = tanh(Wi_n s + bi_n + r*(Wh_n x + bh_n)).
    gwi, gwh = params['gru']['wi'], params['gru']['wh']       # (Z,3D), (D,3D)
    gbi, gbh = params['gru']['bi'], params['gru']['bh']
    w_gs = jnp.concatenate([gwi, jnp.zeros((Z, D), f32)], axis=1)         # (Z, 4D)
    w_gx = jnp.concatenate([gwh[:, :2 * D], jnp.zeros((D, D), f32),
                            gwh[:, 2 * D:]], axis=1)                      # (D, 4D)
    b_g = row(jnp.concatenate([gbi[:2 * D] + gbh[:2 * D],
                               gbi[2 * D:], gbh[2 * D:]]))

    # Decoder weights lane-padded to 128 so the HBM output stores are lane-dense.
    dw = jnp.zeros((D, OUT_LANES), f32).at[:, :dec_out].set(params['decoder']['w'])
    db = jnp.zeros((1, OUT_LANES), f32).at[:, :dec_out].set(params['decoder']['b'])

    inputs = (
        x_pro, w_pro, act_dec, act_exp, eps, attn_bias,
        row(params['norm_latent']['g']), row(params['norm_latent']['b']),
        fused_qkv(params['attn1']), params['attn1']['wo'], row(params['attn1']['bo']),
        row(params['norm']['g']), row(params['norm']['b']),
        params['linear4']['w'], row(params['linear4']['b']),
        wcm, bcm, w_gs, w_gx, b_g, dw, db,
    )

    XROWS = T * BN
    XPAD = (-XROWS) % 8
    kernel = make_actionformer_kernel(B=B, N=N, T=T, H=num_heads, DH=dim_head,
                                      Z=Z, D=D, XPAD=XPAD)
    vmem = pl.BlockSpec(memory_space=pltpu.MemorySpace.VMEM)
    o_x, o_act = pl.pallas_call(
        kernel,
        out_shape=(jax.ShapeDtypeStruct((XROWS + XPAD, OUT_LANES), jnp.float32),
                   jax.ShapeDtypeStruct((ACT_ROWS + ACT_PAD, OUT_LANES), jnp.float32)),
        in_specs=[vmem] * len(inputs),
        out_specs=(vmem, vmem),
    )(*inputs)

    xs = o_x[:XROWS].reshape(T, B, N, OUT_LANES)[..., :dec_out]
    acts = o_act[:ACT_ROWS].reshape(T, B, 1, OUT_LANES)[..., :dec_out]
    return [jnp.concatenate([xs[t], acts[t]], axis=1) for t in range(T)]


# ----------------------------- main ------------------------------------------

if __name__ == "__main__":
    B = 2
    C, Hsp, Wsp = 4, 4, 4
    latent_hdmap_dims = C * Hsp * Wsp      # 64
    n_boxes = 2
    latent_boxes_dims = 16
    num_heads = 2
    dim_head = 16
    embed_dim = 32
    z_channels = 16
    T = 3

    key = jax.random.PRNGKey(0)
    k_param, k_hd, k_box, k_act, k_dri, k_sample = jax.random.split(key, 6)

    params = init_params(k_param, latent_hdmap_dims, latent_boxes_dims,
                         num_heads, dim_head, embed_dim, z_channels,
                         dec_out_dim=embed_dim)

    latent_hdmap = jax.random.normal(k_hd, (B, C, Hsp, Wsp), jnp.float32)
    latent_dense_range_image = jax.random.normal(k_dri, (B, C, Hsp, Wsp), jnp.float32)
    latent_boxes = jax.random.normal(k_box, (B, n_boxes, latent_boxes_dims), jnp.float32)
    action = jax.random.normal(k_act, (B, T, embed_dim), jnp.float32)

    hs = actionformer_forward(params, latent_hdmap, latent_boxes, action,
                              latent_dense_range_image,
                              num_heads=num_heads, dim_head=dim_head,
                              z_channels=z_channels, sample_key=k_sample)
    hs = jax.block_until_ready(hs)
    assert len(hs) == T
    for h in hs:
        assert h.shape == (B, 1 + n_boxes + 1 + 1, embed_dim)
        assert bool(jnp.all(jnp.isfinite(h)))
    print("KERNEL_OK")
</pallas_src>

<mosaic_0001>
module attributes {stable_mosaic.version = 11 : i64} {
  func.func @kernel(%arg0: memref<8x152xf32, #tpu.memory_space<vmem>>, %arg1: memref<152x32xf32, #tpu.memory_space<vmem>>, %arg2: memref<8x32xf32, #tpu.memory_space<vmem>>, %arg3: memref<16x32xf32, #tpu.memory_space<vmem>>, %arg4: memref<16x16xf32, #tpu.memory_space<vmem>>, %arg5: memref<8x8xf32, #tpu.memory_space<vmem>>, %arg6: memref<1x32xf32, #tpu.memory_space<vmem>>, %arg7: memref<1x32xf32, #tpu.memory_space<vmem>>, %arg8: memref<32x96xf32, #tpu.memory_space<vmem>>, %arg9: memref<32x32xf32, #tpu.memory_space<vmem>>, %arg10: memref<1x32xf32, #tpu.memory_space<vmem>>, %arg11: memref<1x32xf32, #tpu.memory_space<vmem>>, %arg12: memref<1x32xf32, #tpu.memory_space<vmem>>, %arg13: memref<32x32xf32, #tpu.memory_space<vmem>>, %arg14: memref<1x32xf32, #tpu.memory_space<vmem>>, %arg15: memref<32x32xf32, #tpu.memory_space<vmem>>, %arg16: memref<1x32xf32, #tpu.memory_space<vmem>>, %arg17: memref<16x128xf32, #tpu.memory_space<vmem>>, %arg18: memref<32x128xf32, #tpu.memory_space<vmem>>, %arg19: memref<1x128xf32, #tpu.memory_space<vmem>>, %arg20: memref<32x128xf32, #tpu.memory_space<vmem>>, %arg21: memref<1x128xf32, #tpu.memory_space<vmem>>, %arg22: memref<24x128xf32, #tpu.memory_space<vmem>>, %arg23: memref<8x128xf32, #tpu.memory_space<vmem>>) attributes {dimension_semantics = [], scalar_prefetch = 0 : i64, scratch_operands = 0 : i64, tpu.core_type = #tpu.core_type<tc>} {
    %c0 = arith.constant 0 : index
    %c0_0 = arith.constant 0 : index
    %0 = vector.load %arg0[%c0, %c0_0] : memref<8x152xf32, #tpu.memory_space<vmem>>, vector<8x152xf32>
    %c0_1 = arith.constant 0 : index
    %c0_2 = arith.constant 0 : index
    %1 = vector.load %arg1[%c0_1, %c0_2] : memref<152x32xf32, #tpu.memory_space<vmem>>, vector<152x32xf32>
    %cst = arith.constant dense<0.000000e+00> : vector<8x32xf32>
    %2 = tpu.matmul %0, %1, %cst {dimension_numbers = #tpu.dot_dimension_numbers<[1], [0], [0], [1], [0, 0, 1, 1], [], []>} : vector<8x152xf32>, vector<152x32xf32>, vector<8x32xf32> -> vector<8x32xf32>
    %c0_3 = arith.constant 0 : index
    %c0_4 = arith.constant 0 : index
    %3 = vector.load %arg6[%c0_3, %c0_4] : memref<1x32xf32, #tpu.memory_space<vmem>>, vector<1x32xf32>
    %c0_5 = arith.constant 0 : index
    %c0_6 = arith.constant 0 : index
    %4 = vector.load %arg7[%c0_5, %c0_6] : memref<1x32xf32, #tpu.memory_space<vmem>>, vector<1x32xf32>
    %cst_7 = arith.constant dense<0.000000e+00> : vector<8xf32>
    %5 = vector.multi_reduction <add>, %2, %cst_7 [1] : vector<8x32xf32> to vector<8xf32>
    %6 = vector.shape_cast %5 : vector<8xf32> to vector<8x1xf32>
    %cst_8 = arith.constant 3.200000e+01 : f32
    %7 = vector.broadcast %cst_8 : f32 to vector<8x1xf32>
    %8 = arith.divf %6, %7 : vector<8x1xf32>
    %9 = vector.broadcast %8 : vector<8x1xf32> to vector<8x32xf32>
    %10 = arith.subf %2, %9 : vector<8x32xf32>
    %11 = arith.mulf %10, %10 : vector<8x32xf32>
    %cst_9 = arith.constant dense<0.000000e+00> : vector<8xf32>
    %12 = vector.multi_reduction <add>, %11, %cst_9 [1] : vector<8x32xf32> to vector<8xf32>
    %13 = vector.shape_cast %12 : vector<8xf32> to vector<8x1xf32>
    %cst_10 = arith.constant 3.200000e+01 : f32
    %14 = vector.broadcast %cst_10 : f32 to vector<8x1xf32>
    %15 = arith.divf %13, %14 : vector<8x1xf32>
    %16 = vector.broadcast %8 : vector<8x1xf32> to vector<8x32xf32>
    %17 = arith.subf %2, %16 : vector<8x32xf32>
    %cst_11 = arith.constant 9.99999974E-6 : f32
    %18 = vector.broadcast %cst_11 : f32 to vector<8x1xf32>
    %19 = arith.addf %15, %18 : vector<8x1xf32>
    %20 = math.rsqrt %19 : vector<8x1xf32>
    %21 = vector.broadcast %20 : vector<8x1xf32> to vector<8x32xf32>
    %22 = arith.mulf %17, %21 : vector<8x32xf32>
    %23 = vector.broadcast %3 : vector<1x32xf32> to vector<8x32xf32>
    %24 = arith.mulf %22, %23 : vector<8x32xf32>
    %25 = vector.broadcast %4 : vector<1x32xf32> to vector<8x32xf32>
    %26 = arith.addf %24, %25 : vector<8x32xf32>
    %c0_12 = arith.constant 0 : index
    %c0_13 = arith.constant 0 : index
    %27 = vector.load %arg8[%c0_12, %c0_13] : memref<32x96xf32, #tpu.memory_space<vmem>>, vector<32x96xf32>
    %c0_14 = arith.constant 0 : index
    %c0_15 = arith.constant 0 : index
    %28 = vector.load %arg9[%c0_14, %c0_15] : memref<32x32xf32, #tpu.memory_space<vmem>>, vector<32x32xf32>
    %c0_16 = arith.constant 0 : index
    %c0_17 = arith.constant 0 : index
    %29 = vector.load %arg10[%c0_16, %c0_17] : memref<1x32xf32, #tpu.memory_space<vmem>>, vector<1x32xf32>
    %c0_18 = arith.constant 0 : index
    %c0_19 = arith.constant 0 : index
    %30 = vector.load %arg5[%c0_18, %c0_19] : memref<8x8xf32, #tpu.memory_space<vmem>>, vector<8x8xf32>
    %cst_20 = arith.constant dense<0.000000e+00> : vector<8x96xf32>
    %31 = tpu.matmul %26, %27, %cst_20 {dimension_numbers = #tpu.dot_dimension_numbers<[1], [0], [0], [1], [0, 0, 1, 1], [], []>} : vector<8x32xf32>, vector<32x96xf32>, vector<8x96xf32> -> vector<8x96xf32>
    %32 = vector.extract_strided_slice %31 {offsets = [0, 0], sizes = [8, 16], strides = [1, 1]} : vector<8x96xf32> to vector<8x16xf32>
    %33 = vector.extract_strided_slice %31 {offsets = [0, 32], sizes = [8, 16], strides = [1, 1]} : vector<8x96xf32> to vector<8x16xf32>
    %34 = vector.extract_strided_slice %31 {offsets = [0, 64], sizes = [8, 16], strides = [1, 1]} : vector<8x96xf32> to vector<8x16xf32>
    %cst_21 = arith.constant dense<0.000000e+00> : vector<8x8xf32>
    %35 = tpu.matmul %32, %33, %cst_21 {dimension_numbers = #tpu.dot_dimension_numbers<[1], [1], [0], [0], [0, 0, 1, 0], [], []>} : vector<8x16xf32>, vector<8x16xf32>, vector<8x8xf32> -> vector<8x8xf32>
    %36 = arith.addf %35, %30 : vector<8x8xf32>
    %cst_22 = arith.constant dense<0xFF800000> : vector<8xf32>
    %37 = vector.multi_reduction <maximumf>, %36, %cst_22 [1] : vector<8x8xf32> to vector<8xf32>
    %38 = vector.shape_cast %37 : vector<8xf32> to vector<8x1xf32>
    %39 = vector.broadcast %38 : vector<8x1xf32> to vector<8x8xf32>
    %40 = arith.subf %36, %39 : vector<8x8xf32>
    %41 = math.exp %40 : vector<8x8xf32>
    %cst_23 = arith.constant dense<0.000000e+00> : vector<8xf32>
    %42 = vector.multi_reduction <add>, %41, %cst_23 [1] : vector<8x8xf32> to vector<8xf32>
    %43 = vector.shape_cast %42 : vector<8xf32> to vector<8x1xf32>
    %44 = tpu.reciprocal %43 {approx = true} : vector<8x1xf32> -> vector<8x1xf32>
    %45 = vector.broadcast %44 : vector<8x1xf32> to vector<8x8xf32>
    %46 = arith.mulf %41, %45 : vector<8x8xf32>
    %cst_24 = arith.constant dense<0.000000e+00> : vector<8x16xf32>
    %47 = tpu.matmul %46, %34, %cst_24 {dimension_numbers = #tpu.dot_dimension_numbers<[1], [0], [0], [1], [0, 0, 1, 1], [], []>} : vector<8x8xf32>, vector<8x16xf32>, vector<8x16xf32> -> vector<8x16xf32>
    %48 = vector.extract_strided_slice %31 {offsets = [0, 16], sizes = [8, 16], strides = [1, 1]} : vector<8x96xf32> to vector<8x16xf32>
    %49 = vector.extract_strided_slice %31 {offsets = [0, 48], sizes = [8, 16], strides = [1, 1]} : vector<8x96xf32> to vector<8x16xf32>
    %50 = vector.extract_strided_slice %31 {offsets = [0, 80], sizes = [8, 16], strides = [1, 1]} : vector<8x96xf32> to vector<8x16xf32>
    %cst_25 = arith.constant dense<0.000000e+00> : vector<8x8xf32>
    %51 = tpu.matmul %48, %49, %cst_25 {dimension_numbers = #tpu.dot_dimension_numbers<[1], [1], [0], [0], [0, 0, 1, 0], [], []>} : vector<8x16xf32>, vector<8x16xf32>, vector<8x8xf32> -> vector<8x8xf32>
    %52 = arith.addf %51, %30 : vector<8x8xf32>
    %cst_26 = arith.constant dense<0xFF800000> : vector<8xf32>
    %53 = vector.multi_reduction <maximumf>, %52, %cst_26 [1] : vector<8x8xf32> to vector<8xf32>
    %54 = vector.shape_cast %53 : vector<8xf32> to vector<8x1xf32>
    %55 = vector.broadcast %54 : vector<8x1xf32> to vector<8x8xf32>
    %56 = arith.subf %52, %55 : vector<8x8xf32>
    %57 = math.exp %56 : vector<8x8xf32>
    %cst_27 = arith.constant dense<0.000000e+00> : vector<8xf32>
    %58 = vector.multi_reduction <add>, %57, %cst_27 [1] : vector<8x8xf32> to vector<8xf32>
    %59 = vector.shape_cast %58 : vector<8xf32> to vector<8x1xf32>
    %60 = tpu.reciprocal %59 {approx = true} : vector<8x1xf32> -> vector<8x1xf32>
    %61 = vector.broadcast %60 : vector<8x1xf32> to vector<8x8xf32>
    %62 = arith.mulf %57, %61 : vector<8x8xf32>
    %cst_28 = arith.constant dense<0.000000e+00> : vector<8x16xf32>
    %63 = tpu.matmul %62, %50, %cst_28 {dimension_numbers = #tpu.dot_dimension_numbers<[1], [0], [0], [1], [0, 0, 1, 1], [], []>} : vector<8x8xf32>, vector<8x16xf32>, vector<8x16xf32> -> vector<8x16xf32>
    %64 = tpu.concatenate %47, %63 in 1 : vector<8x16xf32>, vector<8x16xf32> -> vector<8x32xf32>
    %cst_29 = arith.constant dense<0.000000e+00> : vector<8x32xf32>
    %65 = tpu.matmul %64, %28, %cst_29 {dimension_numbers = #tpu.dot_dimension_numbers<[1], [0], [0], [1], [0, 0, 1, 1], [], []>} : vector<8x32xf32>, vector<32x32xf32>, vector<8x32xf32> -> vector<8x32xf32>
    %66 = vector.broadcast %29 : vector<1x32xf32> to vector<8x32xf32>
    %67 = arith.addf %65, %66 : vector<8x32xf32>
    %c0_30 = arith.constant 0 : index
    %c0_31 = arith.constant 0 : index
    %68 = vector.load %arg11[%c0_30, %c0_31] : memref<1x32xf32, #tpu.memory_space<vmem>>, vector<1x32xf32>
    %c0_32 = arith.constant 0 : index
    %c0_33 = arith.constant 0 : index
    %69 = vector.load %arg12[%c0_32, %c0_33] : memref<1x32xf32, #tpu.memory_space<vmem>>, vector<1x32xf32>
    %cst_34 = arith.constant dense<0.000000e+00> : vector<8xf32>
    %70 = vector.multi_reduction <add>, %67, %cst_34 [1] : vector<8x32xf32> to vector<8xf32>
    %71 = vector.shape_cast %70 : vector<8xf32> to vector<8x1xf32>
    %cst_35 = arith.constant 3.200000e+01 : f32
    %72 = vector.broadcast %cst_35 : f32 to vector<8x1xf32>
    %73 = arith.divf %71, %72 : vector<8x1xf32>
    %74 = vector.broadcast %73 : vector<8x1xf32> to vector<8x32xf32>
    %75 = arith.subf %67, %74 : vector<8x32xf32>
    %76 = arith.mulf %75, %75 : vector<8x32xf32>
    %cst_36 = arith.constant dense<0.000000e+00> : vector<8xf32>
    %77 = vector.multi_reduction <add>, %76, %cst_36 [1] : vector<8x32xf32> to vector<8xf32>
    %78 = vector.shape_cast %77 : vector<8xf32> to vector<8x1xf32>
    %cst_37 = arith.constant 3.200000e+01 : f32
    %79 = vector.broadcast %cst_37 : f32 to vector<8x1xf32>
    %80 = arith.divf %78, %79 : vector<8x1xf32>
    %81 = vector.broadcast %73 : vector<8x1xf32> to vector<8x32xf32>
    %82 = arith.subf %67, %81 : vector<8x32xf32>
    %cst_38 = arith.constant 9.99999974E-6 : f32
    %83 = vector.broadcast %cst_38 : f32 to vector<8x1xf32>
    %84 = arith.addf %80, %83 : vector<8x1xf32>
    %85 = math.rsqrt %84 : vector<8x1xf32>
    %86 = vector.broadcast %85 : vector<8x1xf32> to vector<8x32xf32>
    %87 = arith.mulf %82, %86 : vector<8x32xf32>
    %88 = vector.broadcast %68 : vector<1x32xf32> to vector<8x32xf32>
    %89 = arith.mulf %87, %88 : vector<8x32xf32>
    %90 = vector.broadcast %69 : vector<1x32xf32> to vector<8x32xf32>
    %91 = arith.addf %89, %90 : vector<8x32xf32>
    %c0_39 = arith.constant 0 : index
    %c0_40 = arith.constant 0 : index
    %92 = vector.load %arg13[%c0_39, %c0_40] : memref<32x32xf32, #tpu.memory_space<vmem>>, vector<32x32xf32>
    %cst_41 = arith.constant dense<0.000000e+00> : vector<8x32xf32>
    %93 = tpu.matmul %91, %92, %cst_41 {dimension_numbers = #tpu.dot_dimension_numbers<[1], [0], [0], [1], [0, 0, 1, 1], [], []>} : vector<8x32xf32>, vector<32x32xf32>, vector<8x32xf32> -> vector<8x32xf32>
    %c0_42 = arith.constant 0 : index
    %c0_43 = arith.constant 0 : index
    %94 = vector.load %arg14[%c0_42, %c0_43] : memref<1x32xf32, #tpu.memory_space<vmem>>, vector<1x32xf32>
    %95 = vector.broadcast %94 : vector<1x32xf32> to vector<8x32xf32>
    %96 = arith.addf %93, %95 : vector<8x32xf32>
    %c0_44 = arith.constant 0 : index
    %c0_45 = arith.constant 0 : index
    %97 = vector.load %arg3[%c0_44, %c0_45] : memref<16x32xf32, #tpu.memory_space<vmem>>, vector<16x32xf32>
    %c0_46 = arith.constant 0 : index
    %c0_47 = arith.constant 0 : index
    %98 = vector.load %arg15[%c0_46, %c0_47] : memref<32x32xf32, #tpu.memory_space<vmem>>, vector<32x32xf32>
    %cst_48 = arith.constant dense<0.000000e+00> : vector<16x32xf32>
    %99 = tpu.matmul %97, %98, %cst_48 {dimension_numbers = #tpu.dot_dimension_numbers<[1], [0], [0], [1], [0, 0, 1, 1], [], []>} : vector<16x32xf32>, vector<32x32xf32>, vector<16x32xf32> -> vector<16x32xf32>
    %c0_49 = arith.constant 0 : index
    %c0_50 = arith.constant 0 : index
    %100 = vector.load %arg16[%c0_49, %c0_50] : memref<1x32xf32, #tpu.memory_space<vmem>>, vector<1x32xf32>
    %101 = vector.broadcast %100 : vector<1x32xf32> to vector<16x32xf32>
    %102 = arith.addf %99, %101 : vector<16x32xf32>
    %103 = vector.extract_strided_slice %102 {offsets = [0, 16], sizes = [16, 16], strides = [1, 1]} : vector<16x32xf32> to vector<16x16xf32>
    %cst_51 = arith.constant -3.000000e+01 : f32
    %cst_52 = arith.constant 2.000000e+01 : f32
    %104 = vector.broadcast %cst_51 : f32 to vector<16x16xf32>
    %105 = arith.maximumf %104, %103 : vector<16x16xf32>
    %106 = vector.broadcast %cst_52 : f32 to vector<16x16xf32>
    %107 = arith.minimumf %106, %105 : vector<16x16xf32>
    %cst_53 = arith.constant 5.000000e-01 : f32
    %108 = vector.broadcast %cst_53 : f32 to vector<16x16xf32>
    %109 = arith.mulf %108, %107 : vector<16x16xf32>
    %110 = math.exp %109 : vector<16x16xf32>
    %111 = vector.extract_strided_slice %102 {offsets = [0, 0], sizes = [16, 16], strides = [1, 1]} : vector<16x32xf32> to vector<16x16xf32>
    %c0_54 = arith.constant 0 : index
    %c0_55 = arith.constant 0 : index
    %112 = vector.load %arg4[%c0_54, %c0_55] : memref<16x16xf32, #tpu.memory_space<vmem>>, vector<16x16xf32>
    %113 = arith.mulf %110, %112 : vector<16x16xf32>
    %114 = arith.addf %111, %113 : vector<16x16xf32>
    %c0_56 = arith.constant 0 : index
    %c0_57 = arith.constant 0 : index
    %115 = vector.load %arg17[%c0_56, %c0_57] : memref<16x128xf32, #tpu.memory_space<vmem>>, vector<16x128xf32>
    %cst_58 = arith.constant dense<0.000000e+00> : vector<16x128xf32>
    %116 = tpu.matmul %114, %115, %cst_58 {dimension_numbers = #tpu.dot_dimension_numbers<[1], [0], [0], [1], [0, 0, 1, 1], [], []>} : vector<16x16xf32>, vector<16x128xf32>, vector<16x128xf32> -> vector<16x128xf32>
    %c0_59 = arith.constant 0 : index
    %c0_60 = arith.constant 0 : index
    %117 = vector.load %arg19[%c0_59, %c0_60] : memref<1x128xf32, #tpu.memory_space<vmem>>, vector<1x128xf32>
    %118 = vector.broadcast %117 : vector<1x128xf32> to vector<16x128xf32>
    %119 = arith.addf %116, %118 : vector<16x128xf32>
    %c0_61 = arith.constant 0 : index
    %c0_62 = arith.constant 0 : index
    %120 = vector.load %arg18[%c0_61, %c0_62] : memref<32x128xf32, #tpu.memory_space<vmem>>, vector<32x128xf32>
    %121 = vector.extract_strided_slice %119 {offsets = [0, 0], sizes = [8, 128], strides = [1, 1]} : vector<16x128xf32> to vector<8x128xf32>
    %cst_63 = arith.constant dense<0.000000e+00> : vector<8x128xf32>
    %122 = tpu.matmul %96, %120, %cst_63 {dimension_numbers = #tpu.dot_dimension_numbers<[1], [0], [0], [1], [0, 0, 1, 1], [], []>} : vector<8x32xf32>, vector<32x128xf32>, vector<8x128xf32> -> vector<8x128xf32>
    %123 = arith.addf %121, %122 : vector<8x128xf32>
    %124 = vector.extract_strided_slice %123 {offsets = [0, 0], sizes = [8, 32], strides = [1, 1]} : vector<8x128xf32> to vector<8x32xf32>
    %125 = arith.negf %124 : vector<8x32xf32>
    %126 = math.exp %125 : vector<8x32xf32>
    %cst_64 = arith.constant 1.000000e+00 : f32
    %127 = vector.broadcast %cst_64 : f32 to vector<8x32xf32>
    %128 = arith.addf %127, %126 : vector<8x32xf32>
    %129 = arith.divf %127, %128 : vector<8x32xf32>
    %130 = vector.extract_strided_slice %123 {offsets = [0, 32], sizes = [8, 32], strides = [1, 1]} : vector<8x128xf32> to vector<8x32xf32>
    %131 = arith.negf %130 : vector<8x32xf32>
    %132 = math.exp %131 : vector<8x32xf32>
    %cst_65 = arith.constant 1.000000e+00 : f32
    %133 = vector.broadcast %cst_65 : f32 to vector<8x32xf32>
    %134 = arith.addf %133, %132 : vector<8x32xf32>
    %135 = arith.divf %133, %134 : vector<8x32xf32>
    %136 = vector.extract_strided_slice %123 {offsets = [0, 64], sizes = [8, 32], strides = [1, 1]} : vector<8x128xf32> to vector<8x32xf32>
    %137 = vector.extract_strided_slice %123 {offsets = [0, 96], sizes = [8, 32], strides = [1, 1]} : vector<8x128xf32> to vector<8x32xf32>
    %138 = arith.mulf %129, %137 : vector<8x32xf32>
    %139 = arith.addf %136, %138 : vector<8x32xf32>
    %140 = math.tanh %139 : vector<8x32xf32>
    %cst_66 = arith.constant 1.000000e+00 : f32
    %141 = vector.broadcast %cst_66 : f32 to vector<8x32xf32>
    %142 = arith.subf %141, %135 : vector<8x32xf32>
    %143 = arith.mulf %142, %140 : vector<8x32xf32>
    %144 = arith.mulf %135, %96 : vector<8x32xf32>
    %145 = arith.addf %143, %144 : vector<8x32xf32>
    %146 = vector.extract_strided_slice %119 {offsets = [8, 0], sizes = [8, 128], strides = [1, 1]} : vector<16x128xf32> to vector<8x128xf32>
    %cst_67 = arith.constant dense<0.000000e+00> : vector<8x128xf32>
    %147 = tpu.matmul %145, %120, %cst_67 {dimension_numbers = #tpu.dot_dimension_numbers<[1], [0], [0], [1], [0, 0, 1, 1], [], []>} : vector<8x32xf32>, vector<32x128xf32>, vector<8x128xf32> -> vector<8x128xf32>
    %148 = arith.addf %146, %147 : vector<8x128xf32>
    %149 = vector.extract_strided_slice %148 {offsets = [0, 0], sizes = [8, 32], strides = [1, 1]} : vector<8x128xf32> to vector<8x32xf32>
    %150 = arith.negf %149 : vector<8x32xf32>
    %151 = math.exp %150 : vector<8x32xf32>
    %cst_68 = arith.constant 1.000000e+00 : f32
    %152 = vector.broadcast %cst_68 : f32 to vector<8x32xf32>
    %153 = arith.addf %152, %151 : vector<8x32xf32>
    %154 = arith.divf %152, %153 : vector<8x32xf32>
    %155 = vector.extract_strided_slice %148 {offsets = [0, 32], sizes = [8, 32], strides = [1, 1]} : vector<8x128xf32> to vector<8x32xf32>
    %156 = arith.negf %155 : vector<8x32xf32>
    %157 = math.exp %156 : vector<8x32xf32>
    %cst_69 = arith.constant 1.000000e+00 : f32
    %158 = vector.broadcast %cst_69 : f32 to vector<8x32xf32>
    %159 = arith.addf %158, %157 : vector<8x32xf32>
    %160 = arith.divf %158, %159 : vector<8x32xf32>
    %161 = vector.extract_strided_slice %148 {offsets = [0, 64], sizes = [8, 32], strides = [1, 1]} : vector<8x128xf32> to vector<8x32xf32>
    %162 = vector.extract_strided_slice %148 {offsets = [0, 96], sizes = [8, 32], strides = [1, 1]} : vector<8x128xf32> to vector<8x32xf32>
    %163 = arith.mulf %154, %162 : vector<8x32xf32>
    %164 = arith.addf %161, %163 : vector<8x32xf32>
    %165 = math.tanh %164 : vector<8x32xf32>
    %cst_70 = arith.constant 1.000000e+00 : f32
    %166 = vector.broadcast %cst_70 : f32 to vector<8x32xf32>
    %167 = arith.subf %166, %160 : vector<8x32xf32>
    %168 = arith.mulf %167, %165 : vector<8x32xf32>
    %169 = arith.mulf %160, %145 : vector<8x32xf32>
    %170 = arith.addf %168, %169 : vector<8x32xf32>
    %171 = tpu.concatenate %96, %145, %170 in 0 : vector<8x32xf32>, vector<8x32xf32>, vector<8x32xf32> -> vector<24x32xf32>
    %c0_71 = arith.constant 0 : index
    %c0_72 = arith.constant 0 : index
    %172 = vector.load %arg20[%c0_71, %c0_72] : memref<32x128xf32, #tpu.memory_space<vmem>>, vector<32x128xf32>
    %c0_73 = arith.constant 0 : index
    %c0_74 = arith.constant 0 : index
    %173 = vector.load %arg21[%c0_73, %c0_74] : memref<1x128xf32, #tpu.memory_space<vmem>>, vector<1x128xf32>
    %cst_75 = arith.constant dense<0.000000e+00> : vector<24x128xf32>
    %174 = tpu.matmul %171, %172, %cst_75 {dimension_numbers = #tpu.dot_dimension_numbers<[1], [0], [0], [1], [0, 0, 1, 1], [], []>} : vector<24x32xf32>, vector<32x128xf32>, vector<24x128xf32> -> vector<24x128xf32>
    %175 = vector.broadcast %173 : vector<1x128xf32> to vector<24x128xf32>
    %176 = arith.addf %174, %175 : vector<24x128xf32>
    %c0_76 = arith.constant 0 : index
    %c0_77 = arith.constant 0 : index
    %177 = vector.load %arg22[%c0_76, %c0_77] : memref<24x128xf32, #tpu.memory_space<vmem>>, vector<24x128xf32>
    tpu.vector_store %arg22[%c0_76, %c0_77], %176 {strides = array<i32>} : memref<24x128xf32, #tpu.memory_space<vmem>>, vector<24x128xf32>,
    %c0_78 = arith.constant 0 : index
    %c0_79 = arith.constant 0 : index
    %178 = vector.load %arg2[%c0_78, %c0_79] : memref<8x32xf32, #tpu.memory_space<vmem>>, vector<8x32xf32>
    %cst_80 = arith.constant dense<0.000000e+00> : vector<8x128xf32>
    %179 = tpu.matmul %178, %172, %cst_80 {dimension_numbers = #tpu.dot_dimension_numbers<[1], [0], [0], [1], [0, 0, 1, 1], [], []>} : vector<8x32xf32>, vector<32x128xf32>, vector<8x128xf32> -> vector<8x128xf32>
    %180 = vector.broadcast %173 : vector<1x128xf32> to vector<8x128xf32>
    %181 = arith.addf %179, %180 : vector<8x128xf32>
    %c0_81 = arith.constant 0 : index
    %c0_82 = arith.constant 0 : index
    %182 = vector.load %arg23[%c0_81, %c0_82] : memref<8x128xf32, #tpu.memory_space<vmem>>, vector<8x128xf32>
    tpu.vector_store %arg23[%c0_81, %c0_82], %181 {strides = array<i32>} : memref<8x128xf32, #tpu.memory_space<vmem>>, vector<8x128xf32>,
    return
  }
}

</mosaic_0001>

<llo_original>
// kernel: tpu_custom_call.1
$region0: #{tpu_custom_call.1}
  #allocation0 [shape = 'u32[]', space=smem, size = 0x4, offset = 0x4, fixed_abs, tag = 'smem constant byte address 0x4 - core index']
  #allocation1 [shape = 'u32[144,128]{1,0:T(1,128)}', space=vmem, size = 0x12000, scoped, tag = 'internal scratch']
  %s0 = inlined_call_operand.vmem [shape: f32[8,152], index: 0, kind: input, shape index: {}]
  %s1 = inlined_call_operand.vmem [shape: f32[152,32], index: 1, kind: input, shape index: {}]
  %s2 = inlined_call_operand.hbm [shape: f32[8,32], index: 2, kind: input, shape index: {}]
  %s3 = inlined_call_operand.hbm [shape: f32[16,32], index: 3, kind: input, shape index: {}]
  %s4 = inlined_call_operand.hbm [shape: f32[16,16], index: 4, kind: input, shape index: {}]
  %s5 = inlined_call_operand.hbm [shape: f32[8,8], index: 5, kind: input, shape index: {}]
  %s6 = inlined_call_operand.vmem [shape: f32[1,32], index: 6, kind: input, shape index: {}]
  %s7 = inlined_call_operand.vmem [shape: f32[1,32], index: 7, kind: input, shape index: {}]
  %s8 = inlined_call_operand.vmem [shape: f32[32,96], index: 8, kind: input, shape index: {}]
  %s9 = inlined_call_operand.vmem [shape: f32[32,32], index: 9, kind: input, shape index: {}]
  %s10 = inlined_call_operand.vmem [shape: f32[1,32], index: 10, kind: input, shape index: {}]
  %s11 = inlined_call_operand.vmem [shape: f32[1,32], index: 11, kind: input, shape index: {}]
  %s12 = inlined_call_operand.vmem [shape: f32[1,32], index: 12, kind: input, shape index: {}]
  %s13 = inlined_call_operand.vmem [shape: f32[32,32], index: 13, kind: input, shape index: {}]
  %s14 = inlined_call_operand.vmem [shape: f32[1,32], index: 14, kind: input, shape index: {}]
  %s15 = inlined_call_operand.vmem [shape: f32[32,32], index: 15, kind: input, shape index: {}]
  %s16 = inlined_call_operand.vmem [shape: f32[1,32], index: 16, kind: input, shape index: {}]
  %s17 = inlined_call_operand.vmem [shape: f32[16,128], index: 17, kind: input, shape index: {}]
  %s18 = inlined_call_operand.vmem [shape: f32[32,128], index: 18, kind: input, shape index: {}]
  %s19 = inlined_call_operand.vmem [shape: f32[1,128], index: 19, kind: input, shape index: {}]
  %s20 = inlined_call_operand.vmem [shape: f32[32,128], index: 20, kind: input, shape index: {}]
  %s21 = inlined_call_operand.vmem [shape: f32[1,128], index: 21, kind: input, shape index: {}]
  %s22 = inlined_call_operand.hbm [shape: f32[24,128], index: 22, kind: output, shape index: {0}]
  %s23 = inlined_call_operand.hbm [shape: f32[8,128], index: 23, kind: output, shape index: {1}]
  %24 = xla_tuple %s22, %s23
  %s25 = sld [smem:[#allocation0]]
  $region122: #{tpu_custom_call.1} parent=0
    _
  %s27 = ssub.s32 1, %s25
  %s28 = scalar_select 0, %s27, %s25
  $region1: #{tpu_custom_call.1} parent=0
    #allocation2 [shape = 'u8[4096]{0}', space=vmem, size = 0x1000, scoped, tag = 'input window, operand 2, single buffered']
    #allocation3 [shape = 's32[1]{0}', space=sflag, size = 0x4, scoped, tag = 'scoped memory for tpu_custom_call.1']
    #allocation4 [shape = 's32[1]{0}', space=sflag, size = 0x4, scoped, tag = 'scoped memory for tpu_custom_call.1']
    #allocation5 [shape = 'u8[8192]{0}', space=vmem, size = 0x2000, scoped, tag = 'input window, operand 3, single buffered']
    #allocation6 [shape = 's32[1]{0}', space=sflag, size = 0x4, scoped, tag = 'scoped memory for tpu_custom_call.1']
    #allocation7 [shape = 'u8[8192]{0}', space=vmem, size = 0x2000, scoped, tag = 'input window, operand 4, single buffered']
    #allocation8 [shape = 'u8[4096]{0}', space=vmem, size = 0x1000, scoped, tag = 'input window, operand 5, single buffered']
    #allocation9 [shape = 's32[1]{0}', space=sflag, size = 0x4, scoped, tag = 'scoped memory for tpu_custom_call.1']
    #allocation10 [shape = 'u8[12288]{0}', space=vmem, size = 0x3000, scoped, tag = 'output window, operand 0, single buffered']
    #allocation11 [shape = 'u8[4096]{0}', space=vmem, size = 0x1000, scoped, tag = 'output window, operand 1, single buffered']
    #allocation12 [shape = 's32[1]{0}', space=sflag, size = 0x4, scoped, tag = 'scoped memory for tpu_custom_call.1']
    %29 = vsyncpa [#allocation3], 0
    %30 = vsyncpa [#allocation6], 0
    %31 = vsyncpa [#allocation9], 0
    %32 = vsyncpa [#allocation4], 0
    %33 = vsyncpa [#allocation12], 0
    // Predicated region
    $region2: #{tpu_custom_call.1} parent=1 // pred_check
      _
    $region3: #{tpu_custom_call.1} parent=1 // pred_check_branch
      %35 = sbr.rel (0) target = $region5
    $region4: #{tpu_custom_call.1} parent=1 // pred_region
      _
    $region5: #{tpu_custom_call.1} parent=1 // pred_fallthru
      _
    // Predicated region
    $region6: #{tpu_custom_call.1} parent=1 // pred_check
      _
    $region7: #{tpu_custom_call.1} parent=1 // pred_check_branch
      %37 = sbr.rel (0) target = $region9
    $region8: #{tpu_custom_call.1} parent=1 // pred_region
      _
    $region9: #{tpu_custom_call.1} parent=1 // pred_fallthru
      _
    // Predicated region
    $region10: #{tpu_custom_call.1} parent=1 // pred_check
      _
    $region11: #{tpu_custom_call.1} parent=1 // pred_check_branch
      %39 = sbr.rel (0) target = $region13
    $region12: #{tpu_custom_call.1} parent=1 // pred_region
      %s41 = ssub.s32 128, 128
      %42 = vsyncadd [#allocation3], %s41
      %s44 = sshll.u32 [#allocation2], 4
      %s45 = int_to_ptr.vmem [resolvable:$true] %s44
      %47 = dma.hbm_to_vmem [thread:$0]  %s2, 128, %s45, [#allocation3]
    $region13: #{tpu_custom_call.1} parent=1 // pred_fallthru
      _
    // Predicated region
    $region14: #{tpu_custom_call.1} parent=1 // pred_check
      _
    $region15: #{tpu_custom_call.1} parent=1 // pred_check_branch
      %49 = sbr.rel (0) target = $region17
    $region16: #{tpu_custom_call.1} parent=1 // pred_region
      %s51 = ssub.s32 256, 256
      %52 = vsyncadd [#allocation6], %s51
      %s53 = sshll.u32 [#allocation5], 4
      %s54 = int_to_ptr.vmem [resolvable:$true] %s53
      %59 = dma.hbm_to_vmem [thread:$0]  %s3, 256, %s54, [#allocation6], 128, 128, 8
    $region17: #{tpu_custom_call.1} parent=1 // pred_fallthru
      _
    // Predicated region
    $region18: #{tpu_custom_call.1} parent=1 // pred_check
      _
    $region19: #{tpu_custom_call.1} parent=1 // pred_check_branch
      %61 = sbr.rel (0) target = $region21
    $region20: #{tpu_custom_call.1} parent=1 // pred_region
      %s63 = ssub.s32 256, 256
      %64 = vsyncadd [#allocation6], %s63
      %s65 = sshll.u32 [#allocation7], 4
      %s66 = int_to_ptr.vmem [resolvable:$true] %s65
      %71 = dma.hbm_to_vmem [thread:$0]  %s4, 256, %s66, [#allocation6], 128, 128, 8
    $region21: #{tpu_custom_call.1} parent=1 // pred_fallthru
      _
    // Predicated region
    $region22: #{tpu_custom_call.1} parent=1 // pred_check
      _
    $region23: #{tpu_custom_call.1} parent=1 // pred_check_branch
      %73 = sbr.rel (0) target = $region25
    $region24: #{tpu_custom_call.1} parent=1 // pred_region
      %s75 = ssub.s32 128, 128
      %76 = vsyncadd [#allocation9], %s75
      %s78 = sshll.u32 [#allocation8], 4
      %s79 = int_to_ptr.vmem [resolvable:$true] %s78
      %81 = dma.hbm_to_vmem [thread:$0]  %s5, 128, %s79, [#allocation9]
    $region25: #{tpu_custom_call.1} parent=1 // pred_fallthru
      _
    // Predicated region
    $region26: #{tpu_custom_call.1} parent=1 // pred_check
      _
    $region27: #{tpu_custom_call.1} parent=1 // pred_check_branch
      %83 = sbr.rel (0) target = $region29
    $region28: #{tpu_custom_call.1} parent=1 // pred_region
      _
    $region29: #{tpu_custom_call.1} parent=1 // pred_fallthru
      _
    // Predicated region
    $region30: #{tpu_custom_call.1} parent=1 // pred_check
      _
    $region31: #{tpu_custom_call.1} parent=1 // pred_check_branch
      %85 = sbr.rel (0) target = $region33
    $region32: #{tpu_custom_call.1} parent=1 // pred_region
      _
    $region33: #{tpu_custom_call.1} parent=1 // pred_fallthru
      _
    // Predicated region
    $region34: #{tpu_custom_call.1} parent=1 // pred_check
      _
    $region35: #{tpu_custom_call.1} parent=1 // pred_check_branch
      %87 = sbr.rel (0) target = $region37
    $region36: #{tpu_custom_call.1} parent=1 // pred_region
      _
    $region37: #{tpu_custom_call.1} parent=1 // pred_fallthru
      _
    // Predicated region
    $region38: #{tpu_custom_call.1} parent=1 // pred_check
      _
    $region39: #{tpu_custom_call.1} parent=1 // pred_check_branch
      %89 = sbr.rel (0) target = $region41
    $region40: #{tpu_custom_call.1} parent=1 // pred_region
      _
    $region41: #{tpu_custom_call.1} parent=1 // pred_fallthru
      _
    // Predicated region
    $region42: #{tpu_custom_call.1} parent=1 // pred_check
      _
    $region43: #{tpu_custom_call.1} parent=1 // pred_check_branch
      %91 = sbr.rel (0) target = $region45
    $region44: #{tpu_custom_call.1} parent=1 // pred_region
      _
    $region45: #{tpu_custom_call.1} parent=1 // pred_fallthru
      _
    // Predicated region
    $region46: #{tpu_custom_call.1} parent=1 // pred_check
      _
    $region47: #{tpu_custom_call.1} parent=1 // pred_check_branch
      %93 = sbr.rel (0) target = $region49
    $region48: #{tpu_custom_call.1} parent=1 // pred_region
      _
    $region49: #{tpu_custom_call.1} parent=1 // pred_fallthru
      _
    // Predicated region
    $region50: #{tpu_custom_call.1} parent=1 // pred_check
      _
    $region51: #{tpu_custom_call.1} parent=1 // pred_check_branch
      %95 = sbr.rel (0) target = $region53
    $region52: #{tpu_custom_call.1} parent=1 // pred_region
      _
    $region53: #{tpu_custom_call.1} parent=1 // pred_fallthru
      _
    // Predicated region
    $region54: #{tpu_custom_call.1} parent=1 // pred_check
      _
    $region55: #{tpu_custom_call.1} parent=1 // pred_check_branch
      %97 = sbr.rel (0) target = $region57
    $region56: #{tpu_custom_call.1} parent=1 // pred_region
      _
    $region57: #{tpu_custom_call.1} parent=1 // pred_fallthru
      _
    // Predicated region
    $region58: #{tpu_custom_call.1} parent=1 // pred_check
      _
    $region59: #{tpu_custom_call.1} parent=1 // pred_check_branch
      %99 = sbr.rel (0) target = $region61
    $region60: #{tpu_custom_call.1} parent=1 // pred_region
      _
    $region61: #{tpu_custom_call.1} parent=1 // pred_fallthru
      _
    // Predicated region
    $region62: #{tpu_custom_call.1} parent=1 // pred_check
      _
    $region63: #{tpu_custom_call.1} parent=1 // pred_check_branch
      %101 = sbr.rel (0) target = $region65
    $region64: #{tpu_custom_call.1} parent=1 // pred_region
      _
    $region65: #{tpu_custom_call.1} parent=1 // pred_fallthru
      _
    // Predicated region
    $region66: #{tpu_custom_call.1} parent=1 // pred_check
      _
    $region67: #{tpu_custom_call.1} parent=1 // pred_check_branch
      %103 = sbr.rel (0) target = $region69
    $region68: #{tpu_custom_call.1} parent=1 // pred_region
      _
    $region69: #{tpu_custom_call.1} parent=1 // pred_fallthru
      _
    // Predicated region
    $region70: #{tpu_custom_call.1} parent=1 // pred_check
      _
    $region71: #{tpu_custom_call.1} parent=1 // pred_check_branch
      %105 = sbr.rel (0) target = $region73
    $region72: #{tpu_custom_call.1} parent=1 // pred_region
      _
    $region73: #{tpu_custom_call.1} parent=1 // pred_fallthru
      _
    // Predicated region
    $region74: #{tpu_custom_call.1} parent=1 // pred_check
      _
    $region75: #{tpu_custom_call.1} parent=1 // pred_check_branch
      %107 = sbr.rel (0) target = $region77
    $region76: #{tpu_custom_call.1} parent=1 // pred_region
      _
    $region77: #{tpu_custom_call.1} parent=1 // pred_fallthru
      _
    // Predicated region
    $region78: #{tpu_custom_call.1} parent=1 // pred_check
      _
    $region79: #{tpu_custom_call.1} parent=1 // pred_check_branch
      %109 = sbr.rel (0) target = $region81
    $region80: #{tpu_custom_call.1} parent=1 // pred_region
      _
    $region81: #{tpu_custom_call.1} parent=1 // pred_fallthru
      _
    // Predicated region
    $region82: #{tpu_custom_call.1} parent=1 // pred_check
      _
    $region83: #{tpu_custom_call.1} parent=1 // pred_check_branch
      %111 = sbr.rel (0) target = $region85
    $region84: #{tpu_custom_call.1} parent=1 // pred_region
      _
    $region85: #{tpu_custom_call.1} parent=1 // pred_fallthru
      _
    // Predicated region
    $region86: #{tpu_custom_call.1} parent=1 // pred_check
      _
    $region87: #{tpu_custom_call.1} parent=1 // pred_check_branch
      %113 = sbr.rel (0) target = $region89
    $region88: #{tpu_custom_call.1} parent=1 // pred_region
      _
    $region89: #{tpu_custom_call.1} parent=1 // pred_fallthru
      _
    // Predicated region
    $region90: #{tpu_custom_call.1} parent=1 // pred_check
      _
    $region91: #{tpu_custom_call.1} parent=1 // pred_check_branch
      %115 = sbr.rel (0) target = $region93
    $region92: #{tpu_custom_call.1} parent=1 // pred_region
      %116 = dma.done [#allocation3], 128
    $region93: #{tpu_custom_call.1} parent=1 // pred_fallthru
      _
    // Predicated region
    $region94: #{tpu_custom_call.1} parent=1 // pred_check
      _
    $region95: #{tpu_custom_call.1} parent=1 // pred_check_branch
      %118 = sbr.rel (0) target = $region97
    $region96: #{tpu_custom_call.1} parent=1 // pred_region
      %119 = dma.done [#allocation6], 256
    $region97: #{tpu_custom_call.1} parent=1 // pred_fallthru
      _
    // Predicated region
    $region98: #{tpu_custom_call.1} parent=1 // pred_check
      _
    $region99: #{tpu_custom_call.1} parent=1 // pred_check_branch
      %121 = sbr.rel (0) target = $region101
    $region100: #{tpu_custom_call.1} parent=1 // pred_region
      %122 = dma.done [#allocation6], 256
    $region101: #{tpu_custom_call.1} parent=1 // pred_fallthru
      _
    // Predicated region
    $region102: #{tpu_custom_call.1} parent=1 // pred_check
      _
    $region103: #{tpu_custom_call.1} parent=1 // pred_check_branch
      %124 = sbr.rel (0) target = $region105
    $region104: #{tpu_custom_call.1} parent=1 // pred_region
      %125 = dma.done [#allocation9], 128
    $region105: #{tpu_custom_call.1} parent=1 // pred_fallthru
      _
    %v126 = vld [vmem:[%s0] sm:$0xff]
    %v127 = vld [vmem:[%s0 + $0x8] sm:$0xff]
    %v128 = vld [vmem:[%s1] sm:$0xff]
    %v129 = vld [vmem:[%s1 + $0x8] sm:$0xff]
    %v130 = vld [vmem:[%s1 + $0x10] sm:$0xff]
    %v131 = vld [vmem:[%s1 + $0x18] sm:$0xff]
    %v132 = vld [vmem:[%s1 + $0x20] sm:$0xff]
    %v133 = vld [vmem:[%s1 + $0x28] sm:$0xff]
    %v134 = vld [vmem:[%s1 + $0x30] sm:$0xff]
    %v135 = vld [vmem:[%s1 + $0x38] sm:$0xff]
    %v136 = vld [vmem:[%s1 + $0x40] sm:$0xff]
    %v137 = vld [vmem:[%s1 + $0x48] sm:$0xff]
    %v138 = vld [vmem:[%s1 + $0x50] sm:$0xff]
    %v139 = vld [vmem:[%s1 + $0x58] sm:$0xff]
    %v140 = vld [vmem:[%s1 + $0x60] sm:$0xff]
    %v141 = vld [vmem:[%s1 + $0x68] sm:$0xff]
    %v142 = vld [vmem:[%s1 + $0x70] sm:$0xff]
    %v143 = vld [vmem:[%s1 + $0x78] sm:$0xff]
    %v144 = vld [vmem:[%s1 + $0x80] sm:$0xff]
    %v145 = vld [vmem:[%s1 + $0x88] sm:$0xff]
    %v146 = vld [vmem:[%s1 + $0x90] sm:$0xff]
    %vm147 = vcmask 195584
    %v149 = vsel %vm147, %v127, 0
    %151 = vmatprep.subr.mxu0 0.0
    %152 = vmatpush1.msra.mxu0 %v143
    %153 = vmatprep.subr.mxu0 0.0
    %154 = vmatpush1.msra.mxu0 %v142
    %155 = vmatprep.subr.mxu0 0.0
    %156 = vmatpush1.msra.mxu0 %v141
    %157 = vmatprep.subr.mxu0 0.0
    %158 = vmatpush1.msra.mxu0 %v140
    %159 = vmatprep.subr.mxu0 0.0
    %160 = vmatpush1.msra.mxu0 %v139
    %161 = vmatprep.subr.mxu0 0.0
    %162 = vmatpush1.msra.mxu0 %v138
    %163 = vmatprep.subr.mxu0 0.0
    %164 = vmatpush1.msra.mxu0 %v137
    %165 = vmatprep.subr.mxu0 0.0
    %166 = vmatpush1.msra.mxu0 %v136
    %167 = vmatprep.subr.mxu0 0.0
    %168 = vmatpush1.msra.mxu0 %v135
    %169 = vmatprep.subr.mxu0 0.0
    %170 = vmatpush1.msra.mxu0 %v134
    %171 = vmatprep.subr.mxu0 0.0
    %172 = vmatpush1.msra.mxu0 %v133
    %173 = vmatprep.subr.mxu0 0.0
    %174 = vmatpush1.msra.mxu0 %v132
    %175 = vmatprep.subr.mxu0 0.0
    %176 = vmatpush1.msra.mxu0 %v131
    %177 = vmatprep.subr.mxu0 0.0
    %178 = vmatpush1.msra.mxu0 %v130
    %179 = vmatprep.subr.mxu0 0.0
    %180 = vmatpush1.msra.mxu0 %v129
    %181 = vmatprep.subr.mxu0 0.0
    %182 = vmatpush1.msra.mxu0 %v128
    %183 = vmatprep.subr.mxu0 0.0
    %184 = vmatpush2.msra.mxu0 0.0
    %185 = vmatprep.subr.mxu0 0.0
    %186 = vmatpush2.msra.mxu0 0.0
    %187 = vmatprep.subr.mxu0 0.0
    %188 = vmatpush2.msra.mxu0 0.0
    %189 = vmatprep.subr.mxu0 0.0
    %190 = vmatpush2.msra.mxu0 0.0
    %191 = vmatprep.subr.mxu0 0.0
    %192 = vmatpush2.msra.mxu0 0.0
    %193 = vmatprep.subr.mxu0 0.0
    %194 = vmatpush2.msra.mxu0 0.0
    %195 = vmatprep.subr.mxu0 0.0
    %196 = vmatpush2.msra.mxu0 0.0
    %197 = vmatprep.subr.mxu0 0.0
    %198 = vmatpush2.msra.mxu0 0.0
    %199 = vmatprep.subr.mxu0 0.0
    %200 = vmatpush2.msra.mxu0 0.0
    %201 = vmatprep.subr.mxu0 0.0
    %202 = vmatpush2.msra.mxu0 0.0
    %203 = vmatprep.subr.mxu0 0.0
    %204 = vmatpush2.msra.mxu0 0.0
    %205 = vmatprep.subr.mxu0 0.0
    %206 = vmatpush2.msra.mxu0 0.0
    %207 = vmatprep.subr.mxu0 0.0
    %208 = vmatpush2.msra.mxu0 0.0
    %209 = vmatprep.subr.mxu0 0.0
    %210 = vmatpush2.msra.mxu0 %v146
    %211 = vmatprep.subr.mxu0 0.0
    %212 = vmatpush2.msra.mxu0 %v145
    %213 = vmatprep.subr.mxu0 0.0
    %214 = vmatpush2.msra.mxu0 %v144
    %215 = vmatprep.mubr.f32.mxu0 %v149
    %216 = vmatmul.mubr.f32.gmra.mxu0 %v126
    %v217 = vpop.f32.mrf.mxu0
    %v218 = vadd.f32 0.0, %v217
    %v219 = vpop.f32.mrf.mxu0
    %220 = vdwg.mxu0
    %v221 = vld [vmem:[%s6] sm:$0x1]
    %v222 = vld [vmem:[%s7] sm:$0x1]
    %vm223 = vcmask 261120
    %v224 = vsel %vm223, %v218, 0.0
    %225 = vadd.xlane.f32.xlu0 %v224
    %v226 = vpop.xlane.xlu0 %225
    %v227 = vrcp.pop 32.0
    %v228 = vmul.f32 %v226, %v227
    %v229 = vsub.f32 %v218, %v228
    %v230 = vmul.f32 %v229, %v229
    %v231 = vsel %vm223, %v230, 0.0
    %232 = vadd.xlane.f32.xlu0 %v231
    %v233 = vpop.xlane.xlu0 %232
    %v234 = vmul.f32 %v233, %v227
    %v235 = vadd.f32 %v234, 1e-05
    %v236 = vrsqrt.pop %v235
    %v237 = vmul.f32 %v229, %v236
    %v239 = vlaneseq
    %v240 = vshrl.u32 %v239, 7
    %v241 = vsub.s32 0, %v240
    %v242 = vrot.slane %v221, %v241
    %v244 = vmul.f32 %v237, %v242
    %v246 = vlaneseq
    %v247 = vshrl.u32 %v246, 7
    %v248 = vsub.s32 0, %v247
    %v249 = vrot.slane %v222, %v248
    %v251 = vadd.f32 %v244, %v249
    %v252 = vld [vmem:[%s8] sm:$0xff]
    %v253 = vld [vmem:[%s8 + $0x8] sm:$0xff]
    %v254 = vld [vmem:[%s8 + $0x10] sm:$0xff]
    %v255 = vld [vmem:[%s8 + $0x18] sm:$0xff]
    %v256 = vld [vmem:[%s9] sm:$0xff]
    %v257 = vld [vmem:[%s9 + $0x8] sm:$0xff]
    %v258 = vld [vmem:[%s9 + $0x10] sm:$0xff]
    %v259 = vld [vmem:[%s9 + $0x18] sm:$0xff]
    %v260 = vld [vmem:[%s10] sm:$0x1]
    %v261 = vld [vmem:[#allocation8] sm:$0xff]
    %v263 = vsel %vm223, %v251, 0
    %265 = vmatprep.subr.mxu0 0.0
    %266 = vmatpush1.msra.mxu0 0.0
    %267 = vmatprep.subr.mxu0 0.0
    %268 = vmatpush1.msra.mxu0 0.0
    %269 = vmatprep.subr.mxu0 0.0
    %270 = vmatpush1.msra.mxu0 0.0
    %271 = vmatprep.subr.mxu0 0.0
    %272 = vmatpush1.msra.mxu0 0.0
    %273 = vmatprep.subr.mxu0 0.0
    %274 = vmatpush1.msra.mxu0 0.0
    %275 = vmatprep.subr.mxu0 0.0
    %276 = vmatpush1.msra.mxu0 0.0
    %277 = vmatprep.subr.mxu0 0.0
    %278 = vmatpush1.msra.mxu0 0.0
    %279 = vmatprep.subr.mxu0 0.0
    %280 = vmatpush1.msra.mxu0 0.0
    %281 = vmatprep.subr.mxu0 0.0
    %282 = vmatpush1.msra.mxu0 0.0
    %283 = vmatprep.subr.mxu0 0.0
    %284 = vmatpush1.msra.mxu0 0.0
    %285 = vmatprep.subr.mxu0 0.0
    %286 = vmatpush1.msra.mxu0 0.0
    %287 = vmatprep.subr.mxu0 0.0
    %288 = vmatpush1.msra.mxu0 0.0
    %289 = vmatprep.subr.mxu0 0.0
    %290 = vmatpush1.msra.mxu0 %v255
    %291 = vmatprep.subr.mxu0 0.0
    %292 = vmatpush1.msra.mxu0 %v254
    %293 = vmatprep.subr.mxu0 0.0
    %294 = vmatpush1.msra.mxu0 %v253
    %295 = vmatprep.subr.mxu0 0.0
    %296 = vmatpush1.msra.mxu0 %v252
    %297 = vmatprep.subr.mxu0 0.0
    %298 = vmatpush2.msra.mxu0 0.0
    %299 = vmatprep.subr.mxu0 0.0
    %300 = vmatpush2.msra.mxu0 0.0
    %301 = vmatprep.subr.mxu0 0.0
    %302 = vmatpush2.msra.mxu0 0.0
    %303 = vmatprep.subr.mxu0 0.0
    %304 = vmatpush2.msra.mxu0 0.0
    %305 = vmatprep.subr.mxu0 0.0
    %306 = vmatpush2.msra.mxu0 0.0
    %307 = vmatprep.subr.mxu0 0.0
    %308 = vmatpush2.msra.mxu0 0.0
    %309 = vmatprep.subr.mxu0 0.0
    %310 = vmatpush2.msra.mxu0 0.0
    %311 = vmatprep.subr.mxu0 0.0
    %312 = vmatpush2.msra.mxu0 0.0
    %313 = vmatprep.subr.mxu0 0.0
    %314 = vmatpush2.msra.mxu0 0.0
    %315 = vmatprep.subr.mxu0 0.0
    %316 = vmatpush2.msra.mxu0 0.0
    %317 = vmatprep.subr.mxu0 0.0
    %318 = vmatpush2.msra.mxu0 0.0
    %319 = vmatprep.subr.mxu0 0.0
    %320 = vmatpush2.msra.mxu0 0.0
    %321 = vmatprep.subr.mxu0 0.0
    %322 = vmatpush2.msra.mxu0 0.0
    %323 = vmatprep.subr.mxu0 0.0
    %324 = vmatpush2.msra.mxu0 0.0
    %325 = vmatprep.subr.mxu0 0.0
    %326 = vmatpush2.msra.mxu0 0.0
    %327 = vmatprep.subr.mxu0 0.0
    %328 = vmatpush2.msra.mxu0 0.0
    %329 = vmatprep.mubr.f32.mxu0 0.0
    %330 = vmatmul.mubr.f32.gmra.mxu0 %v263
    %v331 = vpop.f32.mrf.mxu0
    %v332 = vadd.f32 0.0, %v331
    %v333 = vpop.f32.mrf.mxu0
    %334 = vdwg.mxu0
    %336 = vrot.lane.b32.xlu0 %v332, 96
    %v337 = vpop.permute.xlu0 %336
    %vm338 = vcmask 130048
    %v339 = vsel %vm338, %v332, 0
    %v341 = vsel %vm338, %v337, 0
    %343 = vmatprep.subr.mxu0 0.0
    %344 = vmatpush1.xpose.msra.mxu0 0.0
    %345 = vmatprep.subr.mxu0 0.0
    %346 = vmatpush1.xpose.msra.mxu0 0.0
    %347 = vmatprep.subr.mxu0 0.0
    %348 = vmatpush1.xpose.msra.mxu0 0.0
    %349 = vmatprep.subr.mxu0 0.0
    %350 = vmatpush1.xpose.msra.mxu0 0.0
    %351 = vmatprep.subr.mxu0 0.0
    %352 = vmatpush1.xpose.msra.mxu0 0.0
    %353 = vmatprep.subr.mxu0 0.0
    %354 = vmatpush1.xpose.msra.mxu0 0.0
    %355 = vmatprep.subr.mxu0 0.0
    %356 = vmatpush1.xpose.msra.mxu0 0.0
    %357 = vmatprep.subr.mxu0 0.0
    %358 = vmatpush1.xpose.msra.mxu0 0.0
    %359 = vmatprep.subr.mxu0 0.0
    %360 = vmatpush1.xpose.msra.mxu0 0.0
    %361 = vmatprep.subr.mxu0 0.0
    %362 = vmatpush1.xpose.msra.mxu0 0.0
    %363 = vmatprep.subr.mxu0 0.0
    %364 = vmatpush1.xpose.msra.mxu0 0.0
    %365 = vmatprep.subr.mxu0 0.0
    %366 = vmatpush1.xpose.msra.mxu0 0.0
    %367 = vmatprep.subr.mxu0 0.0
    %368 = vmatpush1.xpose.msra.mxu0 0.0
    %369 = vmatprep.subr.mxu0 0.0
    %370 = vmatpush1.xpose.msra.mxu0 0.0
    %371 = vmatprep.subr.mxu0 0.0
    %372 = vmatpush1.xpose.msra.mxu0 0.0
    %373 = vmatprep.subr.mxu0 0.0
    %374 = vmatpush1.xpose.msra.mxu0 %v341
    %375 = vmatprep.subr.mxu0 0.0
    %376 = vmatpush2.xpose.msra.mxu0 0.0
    %377 = vmatprep.subr.mxu0 0.0
    %378 = vmatpush2.xpose.msra.mxu0 0.0
    %379 = vmatprep.subr.mxu0 0.0
    %380 = vmatpush2.xpose.msra.mxu0 0.0
    %381 = vmatprep.subr.mxu0 0.0
    %382 = vmatpush2.xpose.msra.mxu0 0.0
    %383 = vmatprep.subr.mxu0 0.0
    %384 = vmatpush2.xpose.msra.mxu0 0.0
    %385 = vmatprep.subr.mxu0 0.0
    %386 = vmatpush2.xpose.msra.mxu0 0.0
    %387 = vmatprep.subr.mxu0 0.0
    %388 = vmatpush2.xpose.msra.mxu0 0.0
    %389 = vmatprep.subr.mxu0 0.0
    %390 = vmatpush2.xpose.msra.mxu0 0.0
    %391 = vmatprep.subr.mxu0 0.0
    %392 = vmatpush2.xpose.msra.mxu0 0.0
    %393 = vmatprep.subr.mxu0 0.0
    %394 = vmatpush2.xpose.msra.mxu0 0.0
    %395 = vmatprep.subr.mxu0 0.0
    %396 = vmatpush2.xpose.msra.mxu0 0.0
    %397 = vmatprep.subr.mxu0 0.0
    %398 = vmatpush2.xpose.msra.mxu0 0.0
    %399 = vmatprep.subr.mxu0 0.0
    %400 = vmatpush2.xpose.msra.mxu0 0.0
    %401 = vmatprep.subr.mxu0 0.0
    %402 = vmatpush2.xpose.msra.mxu0 0.0
    %403 = vmatprep.subr.mxu0 0.0
    %404 = vmatpush2.xpose.msra.mxu0 0.0
    %405 = vmatprep.subr.mxu0 0.0
    %406 = vmatpush2.xpose.msra.mxu0 0.0
    %407 = vmatprep.mubr.f32.mxu0 0.0
    %408 = vmatmul.mubr.f32.gmra.mxu0 %v339
    %v409 = vpop.f32.mrf.mxu0
    %v410 = vadd.f32 %v261, %v409
    %v411 = vpop.f32.mrf.mxu0
    %412 = vdwg.mxu0
    %vm413 = vcmask 64512
    %v414 = vsel %vm413, %v410, -inf
    %415 = vmax.xlane.f32.xlu0 %v414
    %v416 = vpop.xlane.xlu0 %415
    %v417 = vsub.f32 %v410, %v416
    %v418 = vmul.f32 %v417, 1.442695
    %v419 = vpow.pop %v418
    %v420 = vsel %vm413, %v419, 0.0
    %421 = vadd.xlane.f32.xlu0 %v420
    %v422 = vpop.xlane.xlu0 %421
    %v423 = vrcp.pop %v422
    %v424 = vmul.f32 %v419, %v423
    %425 = vrot.lane.b32.xlu0 %v332, 64
    %v426 = vpop.permute.xlu0 %425
    %v429 = vsel %vm413, %v424, 0
    %431 = vmatprep.subr.mxu0 0.0
    %432 = vmatpush1.msra.mxu0 0.0
    %433 = vmatprep.subr.mxu0 0.0
    %434 = vmatpush1.msra.mxu0 0.0
    %435 = vmatprep.subr.mxu0 0.0
    %436 = vmatpush1.msra.mxu0 0.0
    %437 = vmatprep.subr.mxu0 0.0
    %438 = vmatpush1.msra.mxu0 0.0
    %439 = vmatprep.subr.mxu0 0.0
    %440 = vmatpush1.msra.mxu0 0.0
    %441 = vmatprep.subr.mxu0 0.0
    %442 = vmatpush1.msra.mxu0 0.0
    %443 = vmatprep.subr.mxu0 0.0
    %444 = vmatpush1.msra.mxu0 0.0
    %445 = vmatprep.subr.mxu0 0.0
    %446 = vmatpush1.msra.mxu0 0.0
    %447 = vmatprep.subr.mxu0 0.0
    %448 = vmatpush1.msra.mxu0 0.0
    %449 = vmatprep.subr.mxu0 0.0
    %450 = vmatpush1.msra.mxu0 0.0
    %451 = vmatprep.subr.mxu0 0.0
    %452 = vmatpush1.msra.mxu0 0.0
    %453 = vmatprep.subr.mxu0 0.0
    %454 = vmatpush1.msra.mxu0 0.0
    %455 = vmatprep.subr.mxu0 0.0
    %456 = vmatpush1.msra.mxu0 0.0
    %457 = vmatprep.subr.mxu0 0.0
    %458 = vmatpush1.msra.mxu0 0.0
    %459 = vmatprep.subr.mxu0 0.0
    %460 = vmatpush1.msra.mxu0 0.0
    %461 = vmatprep.subr.mxu0 0.0
    %462 = vmatpush1.msra.mxu0 %v426
    %463 = vmatprep.subr.mxu0 0.0
    %464 = vmatpush2.msra.mxu0 0.0
    %465 = vmatprep.subr.mxu0 0.0
    %466 = vmatpush2.msra.mxu0 0.0
    %467 = vmatprep.subr.mxu0 0.0
    %468 = vmatpush2.msra.mxu0 0.0
    %469 = vmatprep.subr.mxu0 0.0
    %470 = vmatpush2.msra.mxu0 0.0
    %471 = vmatprep.subr.mxu0 0.0
    %472 = vmatpush2.msra.mxu0 0.0
    %473 = vmatprep.subr.mxu0 0.0
    %474 = vmatpush2.msra.mxu0 0.0
    %475 = vmatprep.subr.mxu0 0.0
    %476 = vmatpush2.msra.mxu0 0.0
    %477 = vmatprep.subr.mxu0 0.0
    %478 = vmatpush2.msra.mxu0 0.0
    %479 = vmatprep.subr.mxu0 0.0
    %480 = vmatpush2.msra.mxu0 0.0
    %481 = vmatprep.subr.mxu0 0.0
    %482 = vmatpush2.msra.mxu0 0.0
    %483 = vmatprep.subr.mxu0 0.0
    %484 = vmatpush2.msra.mxu0 0.0
    %485 = vmatprep.subr.mxu0 0.0
    %486 = vmatpush2.msra.mxu0 0.0
    %487 = vmatprep.subr.mxu0 0.0
    %488 = vmatpush2.msra.mxu0 0.0
    %489 = vmatprep.subr.mxu0 0.0
    %490 = vmatpush2.msra.mxu0 0.0
    %491 = vmatprep.subr.mxu0 0.0
    %492 = vmatpush2.msra.mxu0 0.0
    %493 = vmatprep.subr.mxu0 0.0
    %494 = vmatpush2.msra.mxu0 0.0
    %495 = vmatprep.mubr.f32.mxu0 0.0
    %496 = vmatmul.mubr.f32.gmra.mxu0 %v429
    %v497 = vpop.f32.mrf.mxu0
    %v498 = vadd.f32 0.0, %v497
    %v499 = vpop.f32.mrf.mxu0
    %500 = vdwg.mxu0
    %501 = vrot.lane.b32.xlu0 %v332, 112
    %v502 = vpop.permute.xlu0 %501
    %503 = vrot.lane.b32.xlu0 %v332, 80
    %v504 = vpop.permute.xlu0 %503
    %v505 = vsel %vm338, %v502, 0
    %v507 = vsel %vm338, %v504, 0
    %509 = vmatprep.subr.mxu0 0.0
    %510 = vmatpush1.xpose.msra.mxu0 0.0
    %511 = vmatprep.subr.mxu0 0.0
    %512 = vmatpush1.xpose.msra.mxu0 0.0
    %513 = vmatprep.subr.mxu0 0.0
    %514 = vmatpush1.xpose.msra.mxu0 0.0
    %515 = vmatprep.subr.mxu0 0.0
    %516 = vmatpush1.xpose.msra.mxu0 0.0
    %517 = vmatprep.subr.mxu0 0.0
    %518 = vmatpush1.xpose.msra.mxu0 0.0
    %519 = vmatprep.subr.mxu0 0.0
    %520 = vmatpush1.xpose.msra.mxu0 0.0
    %521 = vmatprep.subr.mxu0 0.0
    %522 = vmatpush1.xpose.msra.mxu0 0.0
    %523 = vmatprep.subr.mxu0 0.0
    %524 = vmatpush1.xpose.msra.mxu0 0.0
    %525 = vmatprep.subr.mxu0 0.0
    %526 = vmatpush1.xpose.msra.mxu0 0.0
    %527 = vmatprep.subr.mxu0 0.0
    %528 = vmatpush1.xpose.msra.mxu0 0.0
    %529 = vmatprep.subr.mxu0 0.0
    %530 = vmatpush1.xpose.msra.mxu0 0.0
    %531 = vmatprep.subr.mxu0 0.0
    %532 = vmatpush1.xpose.msra.mxu0 0.0
    %533 = vmatprep.subr.mxu0 0.0
    %534 = vmatpush1.xpose.msra.mxu0 0.0
    %535 = vmatprep.subr.mxu0 0.0
    %536 = vmatpush1.xpose.msra.mxu0 0.0
    %537 = vmatprep.subr.mxu0 0.0
    %538 = vmatpush1.xpose.msra.mxu0 0.0
    %539 = vmatprep.subr.mxu0 0.0
    %540 = vmatpush1.xpose.msra.mxu0 %v507
    %541 = vmatprep.subr.mxu0 0.0
    %542 = vmatpush2.xpose.msra.mxu0 0.0
    %543 = vmatprep.subr.mxu0 0.0
    %544 = vmatpush2.xpose.msra.mxu0 0.0
    %545 = vmatprep.subr.mxu0 0.0
    %546 = vmatpush2.xpose.msra.mxu0 0.0
    %547 = vmatprep.subr.mxu0 0.0
    %548 = vmatpush2.xpose.msra.mxu0 0.0
    %549 = vmatprep.subr.mxu0 0.0
    %550 = vmatpush2.xpose.msra.mxu0 0.0
    %551 = vmatprep.subr.mxu0 0.0
    %552 = vmatpush2.xpose.msra.mxu0 0.0
    %553 = vmatprep.subr.mxu0 0.0
    %554 = vmatpush2.xpose.msra.mxu0 0.0
    %555 = vmatprep.subr.mxu0 0.0
    %556 = vmatpush2.xpose.msra.mxu0 0.0
    %557 = vmatprep.subr.mxu0 0.0
    %558 = vmatpush2.xpose.msra.mxu0 0.0
    %559 = vmatprep.subr.mxu0 0.0
    %560 = vmatpush2.xpose.msra.mxu0 0.0
    %561 = vmatprep.subr.mxu0 0.0
    %562 = vmatpush2.xpose.msra.mxu0 0.0
    %563 = vmatprep.subr.mxu0 0.0
    %564 = vmatpush2.xpose.msra.mxu0 0.0
    %565 = vmatprep.subr.mxu0 0.0
    %566 = vmatpush2.xpose.msra.mxu0 0.0
    %567 = vmatprep.subr.mxu0 0.0
    %568 = vmatpush2.xpose.msra.mxu0 0.0
    %569 = vmatprep.subr.mxu0 0.0
    %570 = vmatpush2.xpose.msra.mxu0 0.0
    %571 = vmatprep.subr.mxu0 0.0
    %572 = vmatpush2.xpose.msra.mxu0 0.0
    %573 = vmatprep.mubr.f32.mxu0 0.0
    %574 = vmatmul.mubr.f32.gmra.mxu0 %v505
    %v575 = vpop.f32.mrf.mxu0
    %v576 = vadd.f32 %v261, %v575
    %v577 = vpop.f32.mrf.mxu0
    %578 = vdwg.mxu0
    %v579 = vsel %vm413, %v576, -inf
    %580 = vmax.xlane.f32.xlu0 %v579
    %v581 = vpop.xlane.xlu0 %580
    %v582 = vsub.f32 %v576, %v581
    %v583 = vmul.f32 %v582, 1.442695
    %v584 = vpow.pop %v583
    %v585 = vsel %vm413, %v584, 0.0
    %586 = vadd.xlane.f32.xlu0 %v585
    %v587 = vpop.xlane.xlu0 %586
    %v588 = vrcp.pop %v587
    %v589 = vmul.f32 %v584, %v588
    %590 = vrot.lane.b32.xlu0 %v332, 48
    %v591 = vpop.permute.xlu0 %590
    %v594 = vsel %vm413, %v589, 0
    %596 = vmatprep.subr.mxu0 0.0
    %597 = vmatpush1.msra.mxu0 0.0
    %598 = vmatprep.subr.mxu0 0.0
    %599 = vmatpush1.msra.mxu0 0.0
    %600 = vmatprep.subr.mxu0 0.0
    %601 = vmatpush1.msra.mxu0 0.0
    %602 = vmatprep.subr.mxu0 0.0
    %603 = vmatpush1.msra.mxu0 0.0
    %604 = vmatprep.subr.mxu0 0.0
    %605 = vmatpush1.msra.mxu0 0.0
    %606 = vmatprep.subr.mxu0 0.0
    %607 = vmatpush1.msra.mxu0 0.0
    %608 = vmatprep.subr.mxu0 0.0
    %609 = vmatpush1.msra.mxu0 0.0
    %610 = vmatprep.subr.mxu0 0.0
    %611 = vmatpush1.msra.mxu0 0.0
    %612 = vmatprep.subr.mxu0 0.0
    %613 = vmatpush1.msra.mxu0 0.0
    %614 = vmatprep.subr.mxu0 0.0
    %615 = vmatpush1.msra.mxu0 0.0
    %616 = vmatprep.subr.mxu0 0.0
    %617 = vmatpush1.msra.mxu0 0.0
    %618 = vmatprep.subr.mxu0 0.0
    %619 = vmatpush1.msra.mxu0 0.0
    %620 = vmatprep.subr.mxu0 0.0
    %621 = vmatpush1.msra.mxu0 0.0
    %622 = vmatprep.subr.mxu0 0.0
    %623 = vmatpush1.msra.mxu0 0.0
    %624 = vmatprep.subr.mxu0 0.0
    %625 = vmatpush1.msra.mxu0 0.0
    %626 = vmatprep.subr.mxu0 0.0
    %627 = vmatpush1.msra.mxu0 %v591
    %628 = vmatprep.subr.mxu0 0.0
    %629 = vmatpush2.msra.mxu0 0.0
    %630 = vmatprep.subr.mxu0 0.0
    %631 = vmatpush2.msra.mxu0 0.0
    %632 = vmatprep.subr.mxu0 0.0
    %633 = vmatpush2.msra.mxu0 0.0
    %634 = vmatprep.subr.mxu0 0.0
    %635 = vmatpush2.msra.mxu0 0.0
    %636 = vmatprep.subr.mxu0 0.0
    %637 = vmatpush2.msra.mxu0 0.0
    %638 = vmatprep.subr.mxu0 0.0
    %639 = vmatpush2.msra.mxu0 0.0
    %640 = vmatprep.subr.mxu0 0.0
    %641 = vmatpush2.msra.mxu0 0.0
    %642 = vmatprep.subr.mxu0 0.0
    %643 = vmatpush2.msra.mxu0 0.0
    %644 = vmatprep.subr.mxu0 0.0
    %645 = vmatpush2.msra.mxu0 0.0
    %646 = vmatprep.subr.mxu0 0.0
    %647 = vmatpush2.msra.mxu0 0.0
    %648 = vmatprep.subr.mxu0 0.0
    %649 = vmatpush2.msra.mxu0 0.0
    %650 = vmatprep.subr.mxu0 0.0
    %651 = vmatpush2.msra.mxu0 0.0
    %652 = vmatprep.subr.mxu0 0.0
    %653 = vmatpush2.msra.mxu0 0.0
    %654 = vmatprep.subr.mxu0 0.0
    %655 = vmatpush2.msra.mxu0 0.0
    %656 = vmatprep.subr.mxu0 0.0
    %657 = vmatpush2.msra.mxu0 0.0
    %658 = vmatprep.subr.mxu0 0.0
    %659 = vmatpush2.msra.mxu0 0.0
    %660 = vmatprep.mubr.f32.mxu0 0.0
    %661 = vmatmul.mubr.f32.gmra.mxu0 %v594
    %v662 = vpop.f32.mrf.mxu0
    %v663 = vadd.f32 0.0, %v662
    %v664 = vpop.f32.mrf.mxu0
    %665 = vdwg.mxu0
    %667 = vrot.lane.b32.xlu0 %v663, 16
    %v668 = vpop.permute.xlu0 %667
    %v670 = vsel %vm338, %v498, %v668
    %v672 = vlaneseq
    %v673 = vshrl.u32 %v672, 7
    %v674 = vsub.s32 0, %v673
    %v675 = vrot.slane %v260, %v674
    %v678 = vsel %vm223, %v670, 0
    %680 = vmatprep.subr.mxu0 0.0
    %681 = vmatpush1.msra.mxu0 0.0
    %682 = vmatprep.subr.mxu0 0.0
    %683 = vmatpush1.msra.mxu0 0.0
    %684 = vmatprep.subr.mxu0 0.0
    %685 = vmatpush1.msra.mxu0 0.0
    %686 = vmatprep.subr.mxu0 0.0
    %687 = vmatpush1.msra.mxu0 0.0
    %688 = vmatprep.subr.mxu0 0.0
    %689 = vmatpush1.msra.mxu0 0.0
    %690 = vmatprep.subr.mxu0 0.0
    %691 = vmatpush1.msra.mxu0 0.0
    %692 = vmatprep.subr.mxu0 0.0
    %693 = vmatpush1.msra.mxu0 0.0
    %694 = vmatprep.subr.mxu0 0.0
    %695 = vmatpush1.msra.mxu0 0.0
    %696 = vmatprep.subr.mxu0 0.0
    %697 = vmatpush1.msra.mxu0 0.0
    %698 = vmatprep.subr.mxu0 0.0
    %699 = vmatpush1.msra.mxu0 0.0
    %700 = vmatprep.subr.mxu0 0.0
    %701 = vmatpush1.msra.mxu0 0.0
    %702 = vmatprep.subr.mxu0 0.0
    %703 = vmatpush1.msra.mxu0 0.0
    %704 = vmatprep.subr.mxu0 0.0
    %705 = vmatpush1.msra.mxu0 %v259
    %706 = vmatprep.subr.mxu0 0.0
    %707 = vmatpush1.msra.mxu0 %v258
    %708 = vmatprep.subr.mxu0 0.0
    %709 = vmatpush1.msra.mxu0 %v257
    %710 = vmatprep.subr.mxu0 0.0
    %711 = vmatpush1.msra.mxu0 %v256
    %712 = vmatprep.subr.mxu0 0.0
    %713 = vmatpush2.msra.mxu0 0.0
    %714 = vmatprep.subr.mxu0 0.0
    %715 = vmatpush2.msra.mxu0 0.0
    %716 = vmatprep.subr.mxu0 0.0
    %717 = vmatpush2.msra.mxu0 0.0
    %718 = vmatprep.subr.mxu0 0.0
    %719 = vmatpush2.msra.mxu0 0.0
    %720 = vmatprep.subr.mxu0 0.0
    %721 = vmatpush2.msra.mxu0 0.0
    %722 = vmatprep.subr.mxu0 0.0
    %723 = vmatpush2.msra.mxu0 0.0
    %724 = vmatprep.subr.mxu0 0.0
    %725 = vmatpush2.msra.mxu0 0.0
    %726 = vmatprep.subr.mxu0 0.0
    %727 = vmatpush2.msra.mxu0 0.0
    %728 = vmatprep.subr.mxu0 0.0
    %729 = vmatpush2.msra.mxu0 0.0
    %730 = vmatprep.subr.mxu0 0.0
    %731 = vmatpush2.msra.mxu0 0.0
    %732 = vmatprep.subr.mxu0 0.0
    %733 = vmatpush2.msra.mxu0 0.0
    %734 = vmatprep.subr.mxu0 0.0
    %735 = vmatpush2.msra.mxu0 0.0
    %736 = vmatprep.subr.mxu0 0.0
    %737 = vmatpush2.msra.mxu0 0.0
    %738 = vmatprep.subr.mxu0 0.0
    %739 = vmatpush2.msra.mxu0 0.0
    %740 = vmatprep.subr.mxu0 0.0
    %741 = vmatpush2.msra.mxu0 0.0
    %742 = vmatprep.subr.mxu0 0.0
    %743 = vmatpush2.msra.mxu0 0.0
    %744 = vmatprep.mubr.f32.mxu0 0.0
    %745 = vmatmul.mubr.f32.gmra.mxu0 %v678
    %v746 = vpop.f32.mrf.mxu0
    %v747 = vadd.f32 %v675, %v746
    %v748 = vpop.f32.mrf.mxu0
    %749 = vdwg.mxu0
    %v750 = vld [vmem:[%s11] sm:$0x1]
    %v751 = vld [vmem:[%s12] sm:$0x1]
    %v752 = vsel %vm223, %v747, 0.0
    %753 = vadd.xlane.f32.xlu0 %v752
    %v754 = vpop.xlane.xlu0 %753
    %v755 = vmul.f32 %v754, %v227
    %v756 = vsub.f32 %v747, %v755
    %v757 = vmul.f32 %v756, %v756
    %v758 = vsel %vm223, %v757, 0.0
    %759 = vadd.xlane.f32.xlu0 %v758
    %v760 = vpop.xlane.xlu0 %759
    %v761 = vmul.f32 %v760, %v227
    %v762 = vadd.f32 %v761, 1e-05
    %v763 = vrsqrt.pop %v762
    %v764 = vmul.f32 %v756, %v763
    %v766 = vlaneseq
    %v767 = vshrl.u32 %v766, 7
    %v768 = vsub.s32 0, %v767
    %v769 = vrot.slane %v750, %v768
    %v771 = vmul.f32 %v764, %v769
    %v773 = vlaneseq
    %v774 = vshrl.u32 %v773, 7
    %v775 = vsub.s32 0, %v774
    %v776 = vrot.slane %v751, %v775
    %v778 = vadd.f32 %v771, %v776
    %v779 = vld [vmem:[%s13] sm:$0xff]
    %v780 = vld [vmem:[%s13 + $0x8] sm:$0xff]
    %v781 = vld [vmem:[%s13 + $0x10] sm:$0xff]
    %v782 = vld [vmem:[%s13 + $0x18] sm:$0xff]
    %v783 = vld [vmem:[%s14] sm:$0x1]
    %v785 = vlaneseq
    %v786 = vshrl.u32 %v785, 7
    %v787 = vsub.s32 0, %v786
    %v788 = vrot.slane %v783, %v787
    %v791 = vsel %vm223, %v778, 0
    %793 = vmatprep.subr.mxu0 0.0
    %794 = vmatpush1.msra.mxu0 0.0
    %795 = vmatprep.subr.mxu0 0.0
    %796 = vmatpush1.msra.mxu0 0.0
    %797 = vmatprep.subr.mxu0 0.0
    %798 = vmatpush1.msra.mxu0 0.0
    %799 = vmatprep.subr.mxu0 0.0
    %800 = vmatpush1.msra.mxu0 0.0
    %801 = vmatprep.subr.mxu0 0.0
    %802 = vmatpush1.msra.mxu0 0.0
    %803 = vmatprep.subr.mxu0 0.0
    %804 = vmatpush1.msra.mxu0 0.0
    %805 = vmatprep.subr.mxu0 0.0
    %806 = vmatpush1.msra.mxu0 0.0
    %807 = vmatprep.subr.mxu0 0.0
    %808 = vmatpush1.msra.mxu0 0.0
    %809 = vmatprep.subr.mxu0 0.0
    %810 = vmatpush1.msra.mxu0 0.0
    %811 = vmatprep.subr.mxu0 0.0
    %812 = vmatpush1.msra.mxu0 0.0
    %813 = vmatprep.subr.mxu0 0.0
    %814 = vmatpush1.msra.mxu0 0.0
    %815 = vmatprep.subr.mxu0 0.0
    %816 = vmatpush1.msra.mxu0 0.0
    %817 = vmatprep.subr.mxu0 0.0
    %818 = vmatpush1.msra.mxu0 %v782
    %819 = vmatprep.subr.mxu0 0.0
    %820 = vmatpush1.msra.mxu0 %v781
    %821 = vmatprep.subr.mxu0 0.0
    %822 = vmatpush1.msra.mxu0 %v780
    %823 = vmatprep.subr.mxu0 0.0
    %824 = vmatpush1.msra.mxu0 %v779
    %825 = vmatprep.subr.mxu0 0.0
    %826 = vmatpush2.msra.mxu0 0.0
    %827 = vmatprep.subr.mxu0 0.0
    %828 = vmatpush2.msra.mxu0 0.0
    %829 = vmatprep.subr.mxu0 0.0
    %830 = vmatpush2.msra.mxu0 0.0
    %831 = vmatprep.subr.mxu0 0.0
    %832 = vmatpush2.msra.mxu0 0.0
    %833 = vmatprep.subr.mxu0 0.0
    %834 = vmatpush2.msra.mxu0 0.0
    %835 = vmatprep.subr.mxu0 0.0
    %836 = vmatpush2.msra.mxu0 0.0
    %837 = vmatprep.subr.mxu0 0.0
    %838 = vmatpush2.msra.mxu0 0.0
    %839 = vmatprep.subr.mxu0 0.0
    %840 = vmatpush2.msra.mxu0 0.0
    %841 = vmatprep.subr.mxu0 0.0
    %842 = vmatpush2.msra.mxu0 0.0
    %843 = vmatprep.subr.mxu0 0.0
    %844 = vmatpush2.msra.mxu0 0.0
    %845 = vmatprep.subr.mxu0 0.0
    %846 = vmatpush2.msra.mxu0 0.0
    %847 = vmatprep.subr.mxu0 0.0
    %848 = vmatpush2.msra.mxu0 0.0
    %849 = vmatprep.subr.mxu0 0.0
    %850 = vmatpush2.msra.mxu0 0.0
    %851 = vmatprep.subr.mxu0 0.0
    %852 = vmatpush2.msra.mxu0 0.0
    %853 = vmatprep.subr.mxu0 0.0
    %854 = vmatpush2.msra.mxu0 0.0
    %855 = vmatprep.subr.mxu0 0.0
    %856 = vmatpush2.msra.mxu0 0.0
    %857 = vmatprep.mubr.f32.mxu0 0.0
    %858 = vmatmul.mubr.f32.gmra.mxu0 %v791
    %v859 = vpop.f32.mrf.mxu0
    %v860 = vadd.f32 %v788, %v859
    %v861 = vpop.f32.mrf.mxu0
    %862 = vdwg.mxu0
    %v863 = vld [vmem:[#allocation5] sm:$0xff]
    %v864 = vld [vmem:[#allocation5 + $0x8] sm:$0xff]
    %v865 = vld [vmem:[%s15] sm:$0xff]
    %v866 = vld [vmem:[%s15 + $0x8] sm:$0xff]
    %v867 = vld [vmem:[%s15 + $0x10] sm:$0xff]
    %v868 = vld [vmem:[%s15 + $0x18] sm:$0xff]
    %v869 = vld [vmem:[%s16] sm:$0x1]
    %v871 = vlaneseq
    %v872 = vshrl.u32 %v871, 7
    %v873 = vsub.s32 0, %v872
    %v874 = vrot.slane %v869, %v873
    %v877 = vsel %vm223, %v863, 0
    %v880 = vsel %vm223, %v864, 0
    %882 = vmatprep.subr.mxu0 0.0
    %883 = vmatpush1.msra.mxu0 0.0
    %884 = vmatprep.subr.mxu0 0.0
    %885 = vmatpush1.msra.mxu0 0.0
    %886 = vmatprep.subr.mxu0 0.0
    %887 = vmatpush1.msra.mxu0 0.0
    %888 = vmatprep.subr.mxu0 0.0
    %889 = vmatpush1.msra.mxu0 0.0
    %890 = vmatprep.subr.mxu0 0.0
    %891 = vmatpush1.msra.mxu0 0.0
    %892 = vmatprep.subr.mxu0 0.0
    %893 = vmatpush1.msra.mxu0 0.0
    %894 = vmatprep.subr.mxu0 0.0
    %895 = vmatpush1.msra.mxu0 0.0
    %896 = vmatprep.subr.mxu0 0.0
    %897 = vmatpush1.msra.mxu0 0.0
    %898 = vmatprep.subr.mxu0 0.0
    %899 = vmatpush1.msra.mxu0 0.0
    %900 = vmatprep.subr.mxu0 0.0
    %901 = vmatpush1.msra.mxu0 0.0
    %902 = vmatprep.subr.mxu0 0.0
    %903 = vmatpush1.msra.mxu0 0.0
    %904 = vmatprep.subr.mxu0 0.0
    %905 = vmatpush1.msra.mxu0 0.0
    %906 = vmatprep.subr.mxu0 0.0
    %907 = vmatpush1.msra.mxu0 %v868
    %908 = vmatprep.subr.mxu0 0.0
    %909 = vmatpush1.msra.mxu0 %v867
    %910 = vmatprep.subr.mxu0 0.0
    %911 = vmatpush1.msra.mxu0 %v866
    %912 = vmatprep.subr.mxu0 0.0
    %913 = vmatpush1.msra.mxu0 %v865
    %914 = vmatprep.subr.mxu0 0.0
    %915 = vmatpush2.msra.mxu0 0.0
    %916 = vmatprep.subr.mxu0 0.0
    %917 = vmatpush2.msra.mxu0 0.0
    %918 = vmatprep.subr.mxu0 0.0
    %919 = vmatpush2.msra.mxu0 0.0
    %920 = vmatprep.subr.mxu0 0.0
    %921 = vmatpush2.msra.mxu0 0.0
    %922 = vmatprep.subr.mxu0 0.0
    %923 = vmatpush2.msra.mxu0 0.0
    %924 = vmatprep.subr.mxu0 0.0
    %925 = vmatpush2.msra.mxu0 0.0
    %926 = vmatprep.subr.mxu0 0.0
    %927 = vmatpush2.msra.mxu0 0.0
    %928 = vmatprep.subr.mxu0 0.0
    %929 = vmatpush2.msra.mxu0 0.0
    %930 = vmatprep.subr.mxu0 0.0
    %931 = vmatpush2.msra.mxu0 0.0
    %932 = vmatprep.subr.mxu0 0.0
    %933 = vmatpush2.msra.mxu0 0.0
    %934 = vmatprep.subr.mxu0 0.0
    %935 = vmatpush2.msra.mxu0 0.0
    %936 = vmatprep.subr.mxu0 0.0
    %937 = vmatpush2.msra.mxu0 0.0
    %938 = vmatprep.subr.mxu0 0.0
    %939 = vmatpush2.msra.mxu0 0.0
    %940 = vmatprep.subr.mxu0 0.0
    %941 = vmatpush2.msra.mxu0 0.0
    %942 = vmatprep.subr.mxu0 0.0
    %943 = vmatpush2.msra.mxu0 0.0
    %944 = vmatprep.subr.mxu0 0.0
    %945 = vmatpush2.msra.mxu0 0.0
    %946 = vmatprep.mubr.f32.mxu0 0.0
    %947 = vmatmul.mubr.f32.gmra.mxu0 %v877
    %v948 = vpop.f32.mrf.mxu0
    %v949 = vadd.f32 %v874, %v948
    %v950 = vpop.f32.mrf.mxu0
    %951 = vmatprep.mubr.f32.mxu0 0.0
    %952 = vmatmul.mubr.f32.gmra.mxu0 %v880
    %v953 = vpop.f32.mrf.mxu0
    %v954 = vadd.f32 %v874, %v953
    %v955 = vpop.f32.mrf.mxu0
    %956 = vdwg.mxu0
    %v957 = vmax.f32 %v949, -30.0
    %v958 = vmax.f32 %v954, -30.0
    %v959 = vmin.f32 %v957, 20.0
    %v960 = vmin.f32 %v958, 20.0
    %v961 = vmul.f32 %v959, 0.5
    %v962 = vmul.f32 %v960, 0.5
    %v963 = vmul.f32 %v961, 1.442695
    %v964 = vpow.pop %v963
    %v965 = vmul.f32 %v962, 1.442695
    %v966 = vpow.pop %v965
    %v967 = vld [vmem:[#allocation7] sm:$0xff]
    %v968 = vld [vmem:[#allocation7 + $0x8] sm:$0xff]
    %971 = vrot.lane.b32.xlu0 %v967, 16
    %v972 = vpop.permute.xlu0 %971
    %973 = vrot.lane.b32.xlu0 %v968, 16
    %v974 = vpop.permute.xlu0 %973
    %v977 = vmul.f32 %v964, %v972
    %v978 = vmul.f32 %v966, %v974
    %981 = vrot.lane.b32.xlu0 %v977, 112
    %v982 = vpop.permute.xlu0 %981
    %983 = vrot.lane.b32.xlu0 %v978, 112
    %v984 = vpop.permute.xlu0 %983
    %v987 = vadd.f32 %v949, %v982
    %v988 = vadd.f32 %v954, %v984
    %v989 = vld [vmem:[%s17] sm:$0xff]
    %v990 = vld [vmem:[%s17 + $0x8] sm:$0xff]
    %v991 = vld [vmem:[%s19] sm:$0x1]
    %v993 = vlaneseq
    %v994 = vshrl.u32 %v993, 7
    %v995 = vsub.s32 0, %v994
    %v996 = vrot.slane %v991, %v995
    %v999 = vsel %vm338, %v987, 0
    %v1002 = vsel %vm338, %v988, 0
    %1004 = vmatprep.subr.mxu0 0.0
    %1005 = vmatpush1.msra.mxu0 0.0
    %1006 = vmatprep.subr.mxu0 0.0
    %1007 = vmatpush1.msra.mxu0 0.0
    %1008 = vmatprep.subr.mxu0 0.0
    %1009 = vmatpush1.msra.mxu0 0.0
    %1010 = vmatprep.subr.mxu0 0.0
    %1011 = vmatpush1.msra.mxu0 0.0
    %1012 = vmatprep.subr.mxu0 0.0
    %1013 = vmatpush1.msra.mxu0 0.0
    %1014 = vmatprep.subr.mxu0 0.0
    %1015 = vmatpush1.msra.mxu0 0.0
    %1016 = vmatprep.subr.mxu0 0.0
    %1017 = vmatpush1.msra.mxu0 0.0
    %1018 = vmatprep.subr.mxu0 0.0
    %1019 = vmatpush1.msra.mxu0 0.0
    %1020 = vmatprep.subr.mxu0 0.0
    %1021 = vmatpush1.msra.mxu0 0.0
    %1022 = vmatprep.subr.mxu0 0.0
    %1023 = vmatpush1.msra.mxu0 0.0
    %1024 = vmatprep.subr.mxu0 0.0
    %1025 = vmatpush1.msra.mxu0 0.0
    %1026 = vmatprep.subr.mxu0 0.0
    %1027 = vmatpush1.msra.mxu0 0.0
    %1028 = vmatprep.subr.mxu0 0.0
    %1029 = vmatpush1.msra.mxu0 0.0
    %1030 = vmatprep.subr.mxu0 0.0
    %1031 = vmatpush1.msra.mxu0 0.0
    %1032 = vmatprep.subr.mxu0 0.0
    %1033 = vmatpush1.msra.mxu0 %v990
    %1034 = vmatprep.subr.mxu0 0.0
    %1035 = vmatpush1.msra.mxu0 %v989
    %1036 = vmatprep.subr.mxu0 0.0
    %1037 = vmatpush2.msra.mxu0 0.0
    %1038 = vmatprep.subr.mxu0 0.0
    %1039 = vmatpush2.msra.mxu0 0.0
    %1040 = vmatprep.subr.mxu0 0.0
    %1041 = vmatpush2.msra.mxu0 0.0
    %1042 = vmatprep.subr.mxu0 0.0
    %1043 = vmatpush2.msra.mxu0 0.0
    %1044 = vmatprep.subr.mxu0 0.0
    %1045 = vmatpush2.msra.mxu0 0.0
    %1046 = vmatprep.subr.mxu0 0.0
    %1047 = vmatpush2.msra.mxu0 0.0
    %1048 = vmatprep.subr.mxu0 0.0
    %1049 = vmatpush2.msra.mxu0 0.0
    %1050 = vmatprep.subr.mxu0 0.0
    %1051 = vmatpush2.msra.mxu0 0.0
    %1052 = vmatprep.subr.mxu0 0.0
    %1053 = vmatpush2.msra.mxu0 0.0
    %1054 = vmatprep.subr.mxu0 0.0
    %1055 = vmatpush2.msra.mxu0 0.0
    %1056 = vmatprep.subr.mxu0 0.0
    %1057 = vmatpush2.msra.mxu0 0.0
    %1058 = vmatprep.subr.mxu0 0.0
    %1059 = vmatpush2.msra.mxu0 0.0
    %1060 = vmatprep.subr.mxu0 0.0
    %1061 = vmatpush2.msra.mxu0 0.0
    %1062 = vmatprep.subr.mxu0 0.0
    %1063 = vmatpush2.msra.mxu0 0.0
    %1064 = vmatprep.subr.mxu0 0.0
    %1065 = vmatpush2.msra.mxu0 0.0
    %1066 = vmatprep.subr.mxu0 0.0
    %1067 = vmatpush2.msra.mxu0 0.0
    %1068 = vmatprep.mubr.f32.mxu0 0.0
    %1069 = vmatmul.mubr.f32.gmra.mxu0 %v999
    %v1070 = vpop.f32.mrf.mxu0
    %v1071 = vadd.f32 %v996, %v1070
    %v1072 = vpop.f32.mrf.mxu0
    %1073 = vmatprep.mubr.f32.mxu0 0.0
    %1074 = vmatmul.mubr.f32.gmra.mxu0 %v1002
    %v1075 = vpop.f32.mrf.mxu0
    %v1076 = vadd.f32 %v996, %v1075
    %v1077 = vpop.f32.mrf.mxu0
    %1078 = vdwg.mxu0
    %v1079 = vld [vmem:[%s18] sm:$0xff]
    %v1080 = vld [vmem:[%s18 + $0x8] sm:$0xff]
    %v1081 = vld [vmem:[%s18 + $0x10] sm:$0xff]
    %v1082 = vld [vmem:[%s18 + $0x18] sm:$0xff]
    %v1084 = vsel %vm223, %v860, 0
    %1086 = vmatprep.subr.mxu0 0.0
    %1087 = vmatpush1.msra.mxu0 0.0
    %1088 = vmatprep.subr.mxu0 0.0
    %1089 = vmatpush1.msra.mxu0 0.0
    %1090 = vmatprep.subr.mxu0 0.0
    %1091 = vmatpush1.msra.mxu0 0.0
    %1092 = vmatprep.subr.mxu0 0.0
    %1093 = vmatpush1.msra.mxu0 0.0
    %1094 = vmatprep.subr.mxu0 0.0
    %1095 = vmatpush1.msra.mxu0 0.0
    %1096 = vmatprep.subr.mxu0 0.0
    %1097 = vmatpush1.msra.mxu0 0.0
    %1098 = vmatprep.subr.mxu0 0.0
    %1099 = vmatpush1.msra.mxu0 0.0
    %1100 = vmatprep.subr.mxu0 0.0
    %1101 = vmatpush1.msra.mxu0 0.0
    %1102 = vmatprep.subr.mxu0 0.0
    %1103 = vmatpush1.msra.mxu0 0.0
    %1104 = vmatprep.subr.mxu0 0.0
    %1105 = vmatpush1.msra.mxu0 0.0
    %1106 = vmatprep.subr.mxu0 0.0
    %1107 = vmatpush1.msra.mxu0 0.0
    %1108 = vmatprep.subr.mxu0 0.0
    %1109 = vmatpush1.msra.mxu0 0.0
    %1110 = vmatprep.subr.mxu0 0.0
    %1111 = vmatpush1.msra.mxu0 %v1082
    %1112 = vmatprep.subr.mxu0 0.0
    %1113 = vmatpush1.msra.mxu0 %v1081
    %1114 = vmatprep.subr.mxu0 0.0
    %1115 = vmatpush1.msra.mxu0 %v1080
    %1116 = vmatprep.subr.mxu0 0.0
    %1117 = vmatpush1.msra.mxu0 %v1079
    %1118 = vmatprep.subr.mxu0 0.0
    %1119 = vmatpush2.msra.mxu0 0.0
    %1120 = vmatprep.subr.mxu0 0.0
    %1121 = vmatpush2.msra.mxu0 0.0
    %1122 = vmatprep.subr.mxu0 0.0
    %1123 = vmatpush2.msra.mxu0 0.0
    %1124 = vmatprep.subr.mxu0 0.0
    %1125 = vmatpush2.msra.mxu0 0.0
    %1126 = vmatprep.subr.mxu0 0.0
    %1127 = vmatpush2.msra.mxu0 0.0
    %1128 = vmatprep.subr.mxu0 0.0
    %1129 = vmatpush2.msra.mxu0 0.0
    %1130 = vmatprep.subr.mxu0 0.0
    %1131 = vmatpush2.msra.mxu0 0.0
    %1132 = vmatprep.subr.mxu0 0.0
    %1133 = vmatpush2.msra.mxu0 0.0
    %1134 = vmatprep.subr.mxu0 0.0
    %1135 = vmatpush2.msra.mxu0 0.0
    %1136 = vmatprep.subr.mxu0 0.0
    %1137 = vmatpush2.msra.mxu0 0.0
    %1138 = vmatprep.subr.mxu0 0.0
    %1139 = vmatpush2.msra.mxu0 0.0
    %1140 = vmatprep.subr.mxu0 0.0
    %1141 = vmatpush2.msra.mxu0 0.0
    %1142 = vmatprep.subr.mxu0 0.0
    %1143 = vmatpush2.msra.mxu0 0.0
    %1144 = vmatprep.subr.mxu0 0.0
    %1145 = vmatpush2.msra.mxu0 0.0
    %1146 = vmatprep.subr.mxu0 0.0
    %1147 = vmatpush2.msra.mxu0 0.0
    %1148 = vmatprep.subr.mxu0 0.0
    %1149 = vmatpush2.msra.mxu0 0.0
    %1150 = vmatprep.mubr.f32.mxu0 0.0
    %1151 = vmatmul.mubr.f32.gmra.mxu0 %v1084
    %v1152 = vpop.f32.mrf.mxu0
    %v1153 = vadd.f32 0.0, %v1152
    %v1154 = vpop.f32.mrf.mxu0
    %1155 = vdwg.mxu0
    %v1156 = vadd.f32 %v1071, %v1153
    %v1157 = vxor.u32 %v1156, 2147483648
    %v1158 = vmul.f32 %v1157, 1.442695
    %v1159 = vpow.pop %v1158
    %v1160 = vadd.f32 %v1159, 1.0
    %v1161 = vrcp.pop %v1160
    %v1162 = vmul.f32 1.0, %v1161
    %1164 = vrot.lane.b32.xlu0 %v1156, 32
    %v1165 = vpop.permute.xlu0 %1164
    %v1167 = vmul.f32 %v1162, %v1165
    %1169 = vrot.lane.b32.xlu0 %v1167, 64
    %v1170 = vpop.permute.xlu0 %1169
    %v1172 = vadd.f32 %v1156, %v1170
    %v1173 = vtanh.pop %v1172
    %v1174 = vsub.f32 1.0, %v1162
    %1176 = vrot.lane.b32.xlu0 %v1173, 96
    %v1177 = vpop.permute.xlu0 %1176
    %v1179 = vmul.f32 %v1174, %v1177
    %1180 = vrot.lane.b32.xlu0 %v860, 32
    %v1181 = vpop.permute.xlu0 %1180
    %v1183 = vmul.f32 %v1162, %v1181
    %v1184 = vadd.f32 %v1179, %v1183
    %1186 = vrot.lane.b32.xlu0 %v1184, 96
    %v1187 = vpop.permute.xlu0 %1186
    %v1188 = vsel %vm223, %v1187, 0
    %1190 = vmatprep.subr.mxu0 0.0
    %1191 = vmatpush1.msra.mxu0 0.0
    %1192 = vmatprep.subr.mxu0 0.0
    %1193 = vmatpush1.msra.mxu0 0.0
    %1194 = vmatprep.subr.mxu0 0.0
    %1195 = vmatpush1.msra.mxu0 0.0
    %1196 = vmatprep.subr.mxu0 0.0
    %1197 = vmatpush1.msra.mxu0 0.0
    %1198 = vmatprep.subr.mxu0 0.0
    %1199 = vmatpush1.msra.mxu0 0.0
    %1200 = vmatprep.subr.mxu0 0.0
    %1201 = vmatpush1.msra.mxu0 0.0
    %1202 = vmatprep.subr.mxu0 0.0
    %1203 = vmatpush1.msra.mxu0 0.0
    %1204 = vmatprep.subr.mxu0 0.0
    %1205 = vmatpush1.msra.mxu0 0.0
    %1206 = vmatprep.subr.mxu0 0.0
    %1207 = vmatpush1.msra.mxu0 0.0
    %1208 = vmatprep.subr.mxu0 0.0
    %1209 = vmatpush1.msra.mxu0 0.0
    %1210 = vmatprep.subr.mxu0 0.0
    %1211 = vmatpush1.msra.mxu0 0.0
    %1212 = vmatprep.subr.mxu0 0.0
    %1213 = vmatpush1.msra.mxu0 0.0
    %1214 = vmatprep.subr.mxu0 0.0
    %1215 = vmatpush1.msra.mxu0 %v1082
    %1216 = vmatprep.subr.mxu0 0.0
    %1217 = vmatpush1.msra.mxu0 %v1081
    %1218 = vmatprep.subr.mxu0 0.0
    %1219 = vmatpush1.msra.mxu0 %v1080
    %1220 = vmatprep.subr.mxu0 0.0
    %1221 = vmatpush1.msra.mxu0 %v1079
    %1222 = vmatprep.subr.mxu0 0.0
    %1223 = vmatpush2.msra.mxu0 0.0
    %1224 = vmatprep.subr.mxu0 0.0
    %1225 = vmatpush2.msra.mxu0 0.0
    %1226 = vmatprep.subr.mxu0 0.0
    %1227 = vmatpush2.msra.mxu0 0.0
    %1228 = vmatprep.subr.mxu0 0.0
    %1229 = vmatpush2.msra.mxu0 0.0
    %1230 = vmatprep.subr.mxu0 0.0
    %1231 = vmatpush2.msra.mxu0 0.0
    %1232 = vmatprep.subr.mxu0 0.0
    %1233 = vmatpush2.msra.mxu0 0.0
    %1234 = vmatprep.subr.mxu0 0.0
    %1235 = vmatpush2.msra.mxu0 0.0
    %1236 = vmatprep.subr.mxu0 0.0
    %1237 = vmatpush2.msra.mxu0 0.0
    %1238 = vmatprep.subr.mxu0 0.0
    %1239 = vmatpush2.msra.mxu0 0.0
    %1240 = vmatprep.subr.mxu0 0.0
    %1241 = vmatpush2.msra.mxu0 0.0
    %1242 = vmatprep.subr.mxu0 0.0
    %1243 = vmatpush2.msra.mxu0 0.0
    %1244 = vmatprep.subr.mxu0 0.0
    %1245 = vmatpush2.msra.mxu0 0.0
    %1246 = vmatprep.subr.mxu0 0.0
    %1247 = vmatpush2.msra.mxu0 0.0
    %1248 = vmatprep.subr.mxu0 0.0
    %1249 = vmatpush2.msra.mxu0 0.0
    %1250 = vmatprep.subr.mxu0 0.0
    %1251 = vmatpush2.msra.mxu0 0.0
    %1252 = vmatprep.subr.mxu0 0.0
    %1253 = vmatpush2.msra.mxu0 0.0
    %1254 = vmatprep.mubr.f32.mxu0 0.0
    %1255 = vmatmul.mubr.f32.gmra.mxu0 %v1188
    %v1256 = vpop.f32.mrf.mxu0
    %v1257 = vadd.f32 0.0, %v1256
    %v1258 = vpop.f32.mrf.mxu0
    %1259 = vdwg.mxu0
    %v1260 = vadd.f32 %v1076, %v1257
    %v1261 = vxor.u32 %v1260, 2147483648
    %v1262 = vmul.f32 %v1261, 1.442695
    %v1263 = vpow.pop %v1262
    %v1264 = vadd.f32 %v1263, 1.0
    %v1265 = vrcp.pop %v1264
    %v1266 = vmul.f32 1.0, %v1265
    %1268 = vrot.lane.b32.xlu0 %v1260, 32
    %v1269 = vpop.permute.xlu0 %1268
    %v1271 = vmul.f32 %v1266, %v1269
    %1273 = vrot.lane.b32.xlu0 %v1271, 64
    %v1274 = vpop.permute.xlu0 %1273
    %v1276 = vadd.f32 %v1260, %v1274
    %v1277 = vtanh.pop %v1276
    %v1278 = vsub.f32 1.0, %v1266
    %1280 = vrot.lane.b32.xlu0 %v1277, 96
    %v1281 = vpop.permute.xlu0 %1280
    %v1283 = vmul.f32 %v1278, %v1281
    %v1284 = vmul.f32 %v1266, %v1184
    %v1285 = vadd.f32 %v1283, %v1284
    %1287 = vrot.lane.b32.xlu0 %v1285, 96
    %v1288 = vpop.permute.xlu0 %1287
    %v1289 = vld [vmem:[%s20] sm:$0xff]
    %v1290 = vld [vmem:[%s20 + $0x8] sm:$0xff]
    %v1291 = vld [vmem:[%s20 + $0x10] sm:$0xff]
    %v1292 = vld [vmem:[%s20 + $0x18] sm:$0xff]
    %v1293 = vld [vmem:[%s21] sm:$0x1]
    %v1295 = vlaneseq
    %v1296 = vshrl.u32 %v1295, 7
    %v1297 = vsub.s32 0, %v1296
    %v1298 = vrot.slane %v1293, %v1297
    %v1300 = vsel %vm223, %v1288, 0
    %1302 = vmatprep.subr.mxu0 0.0
    %1303 = vmatpush1.msra.mxu0 0.0
    %1304 = vmatprep.subr.mxu0 0.0
    %1305 = vmatpush1.msra.mxu0 0.0
    %1306 = vmatprep.subr.mxu0 0.0
    %1307 = vmatpush1.msra.mxu0 0.0
    %1308 = vmatprep.subr.mxu0 0.0
    %1309 = vmatpush1.msra.mxu0 0.0
    %1310 = vmatprep.subr.mxu0 0.0
    %1311 = vmatpush1.msra.mxu0 0.0
    %1312 = vmatprep.subr.mxu0 0.0
    %1313 = vmatpush1.msra.mxu0 0.0
    %1314 = vmatprep.subr.mxu0 0.0
    %1315 = vmatpush1.msra.mxu0 0.0
    %1316 = vmatprep.subr.mxu0 0.0
    %1317 = vmatpush1.msra.mxu0 0.0
    %1318 = vmatprep.subr.mxu0 0.0
    %1319 = vmatpush1.msra.mxu0 0.0
    %1320 = vmatprep.subr.mxu0 0.0
    %1321 = vmatpush1.msra.mxu0 0.0
    %1322 = vmatprep.subr.mxu0 0.0
    %1323 = vmatpush1.msra.mxu0 0.0
    %1324 = vmatprep.subr.mxu0 0.0
    %1325 = vmatpush1.msra.mxu0 0.0
    %1326 = vmatprep.subr.mxu0 0.0
    %1327 = vmatpush1.msra.mxu0 %v1292
    %1328 = vmatprep.subr.mxu0 0.0
    %1329 = vmatpush1.msra.mxu0 %v1291
    %1330 = vmatprep.subr.mxu0 0.0
    %1331 = vmatpush1.msra.mxu0 %v1290
    %1332 = vmatprep.subr.mxu0 0.0
    %1333 = vmatpush1.msra.mxu0 %v1289
    %1334 = vmatprep.subr.mxu0 0.0
    %1335 = vmatpush2.msra.mxu0 0.0
    %1336 = vmatprep.subr.mxu0 0.0
    %1337 = vmatpush2.msra.mxu0 0.0
    %1338 = vmatprep.subr.mxu0 0.0
    %1339 = vmatpush2.msra.mxu0 0.0
    %1340 = vmatprep.subr.mxu0 0.0
    %1341 = vmatpush2.msra.mxu0 0.0
    %1342 = vmatprep.subr.mxu0 0.0
    %1343 = vmatpush2.msra.mxu0 0.0
    %1344 = vmatprep.subr.mxu0 0.0
    %1345 = vmatpush2.msra.mxu0 0.0
    %1346 = vmatprep.subr.mxu0 0.0
    %1347 = vmatpush2.msra.mxu0 0.0
    %1348 = vmatprep.subr.mxu0 0.0
    %1349 = vmatpush2.msra.mxu0 0.0
    %1350 = vmatprep.subr.mxu0 0.0
    %1351 = vmatpush2.msra.mxu0 0.0
    %1352 = vmatprep.subr.mxu0 0.0
    %1353 = vmatpush2.msra.mxu0 0.0
    %1354 = vmatprep.subr.mxu0 0.0
    %1355 = vmatpush2.msra.mxu0 0.0
    %1356 = vmatprep.subr.mxu0 0.0
    %1357 = vmatpush2.msra.mxu0 0.0
    %1358 = vmatprep.subr.mxu0 0.0
    %1359 = vmatpush2.msra.mxu0 0.0
    %1360 = vmatprep.subr.mxu0 0.0
    %1361 = vmatpush2.msra.mxu0 0.0
    %1362 = vmatprep.subr.mxu0 0.0
    %1363 = vmatpush2.msra.mxu0 0.0
    %1364 = vmatprep.subr.mxu0 0.0
    %1365 = vmatpush2.msra.mxu0 0.0
    %1366 = vmatprep.mubr.f32.mxu0 0.0
    %1367 = vmatmul.mubr.f32.gmra.mxu0 %v1084
    %v1368 = vpop.f32.mrf.mxu0
    %v1369 = vadd.f32 %v1298, %v1368
    %v1370 = vpop.f32.mrf.mxu0
    %1371 = vmatprep.mubr.f32.mxu0 0.0
    %1372 = vmatmul.mubr.f32.gmra.mxu0 %v1188
    %v1373 = vpop.f32.mrf.mxu0
    %v1374 = vadd.f32 %v1298, %v1373
    %v1375 = vpop.f32.mrf.mxu0
    %1376 = vmatprep.mubr.f32.mxu0 0.0
    %1377 = vmatmul.mubr.f32.gmra.mxu0 %v1300
    %v1378 = vpop.f32.mrf.mxu0
    %v1379 = vadd.f32 %v1298, %v1378
    %v1380 = vpop.f32.mrf.mxu0
    %1381 = vdwg.mxu0
    %1382 = vst [vmem:[#allocation10] sm:$0xff] %v1369
    %1383 = vst [vmem:[#allocation10 + $0x8] sm:$0xff] %v1374
    %1384 = vst [vmem:[#allocation10 + $0x10] sm:$0xff] %v1379
    %v1385 = vld [vmem:[#allocation2] sm:$0xff]
    %v1387 = vsel %vm223, %v1385, 0
    %1389 = vmatprep.subr.mxu0 0.0
    %1390 = vmatpush1.msra.mxu0 0.0
    %1391 = vmatprep.subr.mxu0 0.0
    %1392 = vmatpush1.msra.mxu0 0.0
    %1393 = vmatprep.subr.mxu0 0.0
    %1394 = vmatpush1.msra.mxu0 0.0
    %1395 = vmatprep.subr.mxu0 0.0
    %1396 = vmatpush1.msra.mxu0 0.0
    %1397 = vmatprep.subr.mxu0 0.0
    %1398 = vmatpush1.msra.mxu0 0.0
    %1399 = vmatprep.subr.mxu0 0.0
    %1400 = vmatpush1.msra.mxu0 0.0
    %1401 = vmatprep.subr.mxu0 0.0
    %1402 = vmatpush1.msra.mxu0 0.0
    %1403 = vmatprep.subr.mxu0 0.0
    %1404 = vmatpush1.msra.mxu0 0.0
    %1405 = vmatprep.subr.mxu0 0.0
    %1406 = vmatpush1.msra.mxu0 0.0
    %1407 = vmatprep.subr.mxu0 0.0
    %1408 = vmatpush1.msra.mxu0 0.0
    %1409 = vmatprep.subr.mxu0 0.0
    %1410 = vmatpush1.msra.mxu0 0.0
    %1411 = vmatprep.subr.mxu0 0.0
    %1412 = vmatpush1.msra.mxu0 0.0
    %1413 = vmatprep.subr.mxu0 0.0
    %1414 = vmatpush1.msra.mxu0 %v1292
    %1415 = vmatprep.subr.mxu0 0.0
    %1416 = vmatpush1.msra.mxu0 %v1291
    %1417 = vmatprep.subr.mxu0 0.0
    %1418 = vmatpush1.msra.mxu0 %v1290
    %1419 = vmatprep.subr.mxu0 0.0
    %1420 = vmatpush1.msra.mxu0 %v1289
    %1421 = vmatprep.subr.mxu0 0.0
    %1422 = vmatpush2.msra.mxu0 0.0
    %1423 = vmatprep.subr.mxu0 0.0
    %1424 = vmatpush2.msra.mxu0 0.0
    %1425 = vmatprep.subr.mxu0 0.0
    %1426 = vmatpush2.msra.mxu0 0.0
    %1427 = vmatprep.subr.mxu0 0.0
    %1428 = vmatpush2.msra.mxu0 0.0
    %1429 = vmatprep.subr.mxu0 0.0
    %1430 = vmatpush2.msra.mxu0 0.0
    %1431 = vmatprep.subr.mxu0 0.0
    %1432 = vmatpush2.msra.mxu0 0.0
    %1433 = vmatprep.subr.mxu0 0.0
    %1434 = vmatpush2.msra.mxu0 0.0
    %1435 = vmatprep.subr.mxu0 0.0
    %1436 = vmatpush2.msra.mxu0 0.0
    %1437 = vmatprep.subr.mxu0 0.0
    %1438 = vmatpush2.msra.mxu0 0.0
    %1439 = vmatprep.subr.mxu0 0.0
    %1440 = vmatpush2.msra.mxu0 0.0
    %1441 = vmatprep.subr.mxu0 0.0
    %1442 = vmatpush2.msra.mxu0 0.0
    %1443 = vmatprep.subr.mxu0 0.0
    %1444 = vmatpush2.msra.mxu0 0.0
    %1445 = vmatprep.subr.mxu0 0.0
    %1446 = vmatpush2.msra.mxu0 0.0
    %1447 = vmatprep.subr.mxu0 0.0
    %1448 = vmatpush2.msra.mxu0 0.0
    %1449 = vmatprep.subr.mxu0 0.0
    %1450 = vmatpush2.msra.mxu0 0.0
    %1451 = vmatprep.subr.mxu0 0.0
    %1452 = vmatpush2.msra.mxu0 0.0
    %1453 = vmatprep.mubr.f32.mxu0 0.0
    %1454 = vmatmul.mubr.f32.gmra.mxu0 %v1387
    %v1455 = vpop.f32.mrf.mxu0
    %v1456 = vadd.f32 %v1298, %v1455
    %v1457 = vpop.f32.mrf.mxu0
    %1458 = vdwg.mxu0
    %1459 = vst [vmem:[#allocation11] sm:$0xff] %v1456
    // Predicated region
    $region106: #{tpu_custom_call.1} parent=1 // pred_check
      _
    $region107: #{tpu_custom_call.1} parent=1 // pred_check_branch
      %1461 = sbr.rel (0) target = $region109
    $region108: #{tpu_custom_call.1} parent=1 // pred_region
      %s1463 = ssub.s32 384, 384
      %1464 = vsyncadd [#allocation4], %s1463
      %s1465 = sshll.u32 [#allocation10], 4
      %s1466 = int_to_ptr.vmem [resolvable:$true] %s1465
      %1471 = dma.vmem_to_hbm [thread:$0]  %s1466, 384, %s22, [#allocation4], 128, 128, 8
    $region109: #{tpu_custom_call.1} parent=1 // pred_fallthru
      _
    // Predicated region
    $region110: #{tpu_custom_call.1} parent=1 // pred_check
      _
    $region111: #{tpu_custom_call.1} parent=1 // pred_check_branch
      %1473 = sbr.rel (0) target = $region113
    $region112: #{tpu_custom_call.1} parent=1 // pred_region
      %s1475 = ssub.s32 128, 128
      %1476 = vsyncadd [#allocation12], %s1475
      %s1478 = sshll.u32 [#allocation11], 4
      %s1479 = int_to_ptr.vmem [resolvable:$true] %s1478
      %1481 = dma.vmem_to_hbm [thread:$0]  %s1479, 128, %s23, [#allocation12]
    $region113: #{tpu_custom_call.1} parent=1 // pred_fallthru
      _
    // Predicated region
    $region114: #{tpu_custom_call.1} parent=1 // pred_check
      _
    $region115: #{tpu_custom_call.1} parent=1 // pred_check_branch
      %1483 = sbr.rel (0) target = $region117
    $region116: #{tpu_custom_call.1} parent=1 // pred_region
      %1484 = dma.done [#allocation4], 384
    $region117: #{tpu_custom_call.1} parent=1 // pred_fallthru
      _
    // Predicated region
    $region118: #{tpu_custom_call.1} parent=1 // pred_check
      _
    $region119: #{tpu_custom_call.1} parent=1 // pred_check_branch
      %1486 = sbr.rel (0) target = $region121
    $region120: #{tpu_custom_call.1} parent=1 // pred_region
      %1487 = dma.done [#allocation12], 128
    $region121: #{tpu_custom_call.1} parent=1 // pred_fallthru
      _
    %1488 = vsyncpa [#allocation3], 1
    %1489 = vsyncpa [#allocation6], 1
    %1490 = vsyncpa [#allocation9], 1
    %1491 = vsyncpa [#allocation4], 1
    %1492 = vsyncpa [#allocation12], 1

</llo_original>
